<compile_context>
chip_gen: v6e
topology: v6e:2x2x1
jax: 0.10.0
libtpu: 0.0.40
codegen_flags: <defaults>
</compile_context>

<pallas_src>
import functools

import jax
import jax.numpy as jnp
from jax import lax
from jax.experimental import pallas as pl
from jax.experimental.pallas import tpu as pltpu


def _mha_kernel(mask_ref, xq_ref, xf_ref, wq_ref, wkv_ref, wp_ref, bp_ref,
                o_ref, slab_ref, *, num_heads, head_size, q_block, seq_len,
                compute_dtype):
    """One grid step == (batch element, query block)."""
    qi = pl.program_id(1)
    nh_h = num_heads * head_size
    scale = head_size ** (-0.5)

    xq = xq_ref[0]                     # (TQ, C) compute_dtype
    xf = xf_ref[0]                     # (T,  C) compute_dtype

    # Fused projections: one wide matmul per Q and per K|V (all heads at once).
    # Fold 1/sqrt(H) into q here (cheap (TQ, nh*H) multiply, not (TQ, T)).
    q_all = (jnp.dot(xq, wq_ref[...], preferred_element_type=jnp.float32)
             * scale).astype(compute_dtype)                       # (TQ, nh*H)
    kv_all = jnp.dot(xf, wkv_ref[...],
                     preferred_element_type=jnp.float32
                     ).astype(compute_dtype)                      # (T, 2*nh*H)

    # Causal + key-padding mask, built on-chip. mask_ref block is (1, 1, T).
    row = lax.broadcasted_iota(jnp.int32, (q_block, seq_len), 0) + qi * q_block
    col = lax.broadcasted_iota(jnp.int32, (q_block, seq_len), 1)
    keep = jnp.logical_and(col <= row, mask_ref[0] != 0)          # (TQ, T)

    for h in range(num_heads):         # static unroll; num_heads is small
        sl = slice(h * head_size, (h + 1) * head_size)
        qh = q_all[:, sl]                                         # (TQ, H)
        kh = kv_all[:, sl]                                        # (T,  H)
        vh = kv_all[:, nh_h + h * head_size: nh_h + (h + 1) * head_size]

        # Contract on the last dim of both operands -- no k.T relayout.
        s = lax.dot_general(qh, kh, (((1,), (1,)), ((), ())),
                            preferred_element_type=jnp.float32)   # (TQ, T)
        # Large finite negative (not -inf): avoids NaN on fully-masked rows.
        s = jnp.where(keep, s, jnp.float32(-1e30))

        m = jnp.max(s, axis=-1, keepdims=True)
        e = jnp.exp(s - m)
        denom = jnp.sum(e, axis=-1, keepdims=True)
        p = e * pl.reciprocal(denom, approx=False)                # softmax, f32

        # Slab write (no concatenate): output slab is lane-dense for the proj.
        slab_ref[:, sl] = jnp.dot(p.astype(compute_dtype), vh,
                                  preferred_element_type=jnp.float32
                                  ).astype(slab_ref.dtype)

    proj = jnp.dot(slab_ref[...], wp_ref[...],
                   preferred_element_type=jnp.float32)            # (TQ, C)
    o_ref[0] = (proj + bp_ref[...]).astype(o_ref.dtype)


def multi_head_masked_attention(x, wq, wk, wv, wp, bp, mask=None, *,
                                q_block=None, compute_dtype=jnp.bfloat16):
    """x: (B, T, C); wq/wk/wv: (num_heads, C, H); wp: (num_heads*H, C); bp: (C,)
    mask: None, (B, T) or (B, 1, T) key-padding mask (entries == 0 masked out).
    """
    B, T, C = x.shape
    num_heads, _, H = wq.shape
    nh_h = num_heads * H

    if q_block is None:
        q_block = 128 if T % 128 == 0 else T
    assert T % q_block == 0  # TODO(synk): pad / handle ragged sequence lengths
    n_q = T // q_block

    # Stack per-head weights into wide, lane-dense matmul operands (done once,
    # outside the kernel).
    wq_s = jnp.transpose(wq, (1, 0, 2)).reshape(C, nh_h)          # (C, nh*H)
    wk_s = jnp.transpose(wk, (1, 0, 2)).reshape(C, nh_h)
    wv_s = jnp.transpose(wv, (1, 0, 2)).reshape(C, nh_h)
    wkv_s = jnp.concatenate([wk_s, wv_s], axis=-1)                # (C, 2*nh*H)

    xc = x.astype(compute_dtype)
    wq_c = wq_s.astype(compute_dtype)
    wkv_c = wkv_s.astype(compute_dtype)
    wp_c = wp.astype(compute_dtype)
    bp2 = bp.reshape(1, C).astype(jnp.float32)

    # Tiny key-padding mask (O(B*T) bytes), int32 for a clean TPU layout.
    # TODO(synk): arbitrary (B, T, T) attention masks are not supported here;
    # only key-padding masks broadcast over the query axis (as in the test).
    if mask is None:
        mask_i = jnp.ones((B, 1, T), jnp.int32)
    else:
        m = jnp.asarray(mask)
        if m.ndim == 2:
            m = m[:, None, :]
        mask_i = (jnp.broadcast_to(m, (B, 1, T)) != 0).astype(jnp.int32)

    kernel = functools.partial(
        _mha_kernel, num_heads=num_heads, head_size=H,
        q_block=q_block, seq_len=T, compute_dtype=compute_dtype)

    # NOTE: constant-index weight blocks could be single-buffered
    # (pipeline_mode=pl.Buffered(1)) to reclaim VMEM; they are tiny here so we
    # keep the default buffering for maximal portability.
    return pl.pallas_call(
        kernel,
        out_shape=jax.ShapeDtypeStruct((B, T, C), x.dtype),
        grid=(B, n_q),
        in_specs=[
            pl.BlockSpec((1, 1, T), lambda b, q: (b, 0, 0)),        # key mask
            pl.BlockSpec((1, q_block, C), lambda b, q: (b, q, 0)),  # x (queries)
            pl.BlockSpec((1, T, C), lambda b, q: (b, 0, 0)),        # x (keys/values)
            pl.BlockSpec((C, nh_h), lambda b, q: (0, 0)),           # Wq stacked
            pl.BlockSpec((C, 2 * nh_h), lambda b, q: (0, 0)),       # Wk|Wv stacked
            pl.BlockSpec((nh_h, C), lambda b, q: (0, 0)),           # Wproj
            pl.BlockSpec((1, C), lambda b, q: (0, 0)),              # bproj
        ],
        out_specs=pl.BlockSpec((1, q_block, C), lambda b, q: (b, q, 0)),
        scratch_shapes=[pltpu.VMEM((q_block, nh_h), compute_dtype)],
        compiler_params=pltpu.CompilerParams(
            dimension_semantics=("parallel", "parallel"),
            vmem_limit_bytes=64 * 1024 * 1024),
    )(mask_i, xc, xc, wq_c, wkv_c, wp_c, bp2)


def _reference(x, wq, wk, wv, wp, bp, mask=None):
    """Pure-JAX mirror of the PyTorch forward for verification."""
    B, T, C = x.shape
    num_heads, _, H = wq.shape
    causal = jnp.tril(jnp.ones((T, T), dtype=bool))
    keep = causal if mask is None else jnp.logical_and(
        causal, jnp.broadcast_to(mask, (B, T, T)) != 0)
    outs = []
    for h in range(num_heads):
        q = x @ wq[h]
        k = x @ wk[h]
        v = x @ wv[h]
        wei = (q @ jnp.swapaxes(k, -2, -1)) * (H ** -0.5)
        wei = jnp.where(keep, wei, -jnp.inf)
        wei = jax.nn.softmax(wei, axis=-1)
        outs.append(wei @ v)
    cat = jnp.concatenate(outs, axis=-1)
    return cat @ wp + bp


if __name__ == "__main__":
    # small, module-consistent shapes
    B, T = 2, 8            # batch, sequence (block_size >= T)
    n_embd = 32
    num_heads = 4
    head_size = 8

    key = jax.random.PRNGKey(0)
    kx, kq, kk, kv, kp, kb, km = jax.random.split(key, 7)

    x = jax.random.normal(kx, (B, T, n_embd), dtype=jnp.float32)

    # deterministic synthetic parameters (nn.Linear-like scale)
    s_in = 1.0 / (n_embd ** 0.5)
    wq = jax.random.uniform(kq, (num_heads, n_embd, head_size), jnp.float32, -s_in, s_in)
    wk = jax.random.uniform(kk, (num_heads, n_embd, head_size), jnp.float32, -s_in, s_in)
    wv = jax.random.uniform(kv, (num_heads, n_embd, head_size), jnp.float32, -s_in, s_in)
    s_pr = 1.0 / ((num_heads * head_size) ** 0.5)
    wp = jax.random.uniform(kp, (num_heads * head_size, n_embd), jnp.float32, -s_pr, s_pr)
    bp = jax.random.uniform(kb, (n_embd,), jnp.float32, -s_pr, s_pr)

    # key-padding mask (1 = keep), broadcast over the query axis like PyTorch
    mask = (jax.random.uniform(km, (B, 1, T)) > 0.1).astype(jnp.float32)
    mask = mask.at[:, :, 0].set(1.0)   # keep first key so no row is fully masked

    ref = _reference(x, wq, wk, wv, wp, bp, mask)

    # exact-math path (f32 matmuls) -- tight check
    out_f32 = multi_head_masked_attention(x, wq, wk, wv, wp, bp, mask,
                                          compute_dtype=jnp.float32)
    out_f32 = jax.block_until_ready(out_f32)
    assert out_f32.shape == (B, T, n_embd)
    assert jnp.allclose(out_f32, ref, atol=1e-5, rtol=1e-5), "f32 mismatch vs reference"

    # fast path (bf16 matmuls, f32 accumulation / f32 softmax) -- looser check
    out_bf16 = multi_head_masked_attention(x, wq, wk, wv, wp, bp, mask)
    out_bf16 = jax.block_until_ready(out_bf16)
    assert out_bf16.shape == (B, T, n_embd)
    assert jnp.allclose(out_bf16, ref, atol=5e-2, rtol=5e-2), "bf16 mismatch vs reference"

    print("KERNEL_OK")
</pallas_src>

<mosaic_0001>
module attributes {stable_mosaic.version = 11 : i64} {
  func.func @_mha_kernel(%arg0: i32, %arg1: i32, %arg2: memref<1x1x8xi32, #tpu.memory_space<vmem>>, %arg3: memref<1x8x32xf32, #tpu.memory_space<vmem>>, %arg4: memref<1x8x32xf32, #tpu.memory_space<vmem>>, %arg5: memref<32x32xf32, #tpu.memory_space<vmem>>, %arg6: memref<32x64xf32, #tpu.memory_space<vmem>>, %arg7: memref<32x32xf32, #tpu.memory_space<vmem>>, %arg8: memref<1x32xf32, #tpu.memory_space<vmem>>, %arg9: memref<1x8x32xf32, #tpu.memory_space<vmem>>, %arg10: memref<8x32xf32, #tpu.memory_space<vmem>>) attributes {dimension_semantics = [#tpu.dimension_semantics<parallel>, #tpu.dimension_semantics<parallel>], iteration_bounds = array<i64: 2, 1>, scalar_prefetch = 0 : i64, scratch_operands = 1 : i64, tpu.core_type = #tpu.core_type<tc>, window_params = [{transform_indices = @transform_0, window_bounds = array<i64: 1, 1, 8>}, {transform_indices = @transform_1, window_bounds = array<i64: 1, 8, 32>}, {transform_indices = @transform_2, window_bounds = array<i64: 1, 8, 32>}, {pipeline_mode = #tpu.pipeline_mode<synchronous>, transform_indices = @transform_3, window_bounds = array<i64: 32, 32>}, {pipeline_mode = #tpu.pipeline_mode<synchronous>, transform_indices = @transform_4, window_bounds = array<i64: 32, 64>}, {pipeline_mode = #tpu.pipeline_mode<synchronous>, transform_indices = @transform_5, window_bounds = array<i64: 32, 32>}, {pipeline_mode = #tpu.pipeline_mode<synchronous>, transform_indices = @transform_6, window_bounds = array<i64: 1, 32>}, {transform_indices = @transform_7, window_bounds = array<i64: 1, 8, 32>}]} {
    %c0 = arith.constant 0 : index
    %c0_0 = arith.constant 0 : index
    %c0_1 = arith.constant 0 : index
    %0 = vector.load %arg3[%c0, %c0_0, %c0_1] : memref<1x8x32xf32, #tpu.memory_space<vmem>>, vector<1x8x32xf32>
    %1 = vector.shape_cast %0 : vector<1x8x32xf32> to vector<8x32xf32>
    %c0_2 = arith.constant 0 : index
    %c0_3 = arith.constant 0 : index
    %c0_4 = arith.constant 0 : index
    %2 = vector.load %arg4[%c0_2, %c0_3, %c0_4] : memref<1x8x32xf32, #tpu.memory_space<vmem>>, vector<1x8x32xf32>
    %3 = vector.shape_cast %2 : vector<1x8x32xf32> to vector<8x32xf32>
    %c0_5 = arith.constant 0 : index
    %c0_6 = arith.constant 0 : index
    %4 = vector.load %arg5[%c0_5, %c0_6] : memref<32x32xf32, #tpu.memory_space<vmem>>, vector<32x32xf32>
    %cst = arith.constant dense<0.000000e+00> : vector<8x32xf32>
    %5 = tpu.matmul %1, %4, %cst {dimension_numbers = #tpu.dot_dimension_numbers<[1], [0], [0], [1], [0, 0, 1, 1], [], []>} : vector<8x32xf32>, vector<32x32xf32>, vector<8x32xf32> -> vector<8x32xf32>
    %cst_7 = arith.constant 0.353553385 : f32
    %6 = vector.broadcast %cst_7 : f32 to vector<8x32xf32>
    %7 = arith.mulf %5, %6 : vector<8x32xf32>
    %c0_8 = arith.constant 0 : index
    %c0_9 = arith.constant 0 : index
    %8 = vector.load %arg6[%c0_8, %c0_9] : memref<32x64xf32, #tpu.memory_space<vmem>>, vector<32x64xf32>
    %cst_10 = arith.constant dense<0.000000e+00> : vector<8x64xf32>
    %9 = tpu.matmul %3, %8, %cst_10 {dimension_numbers = #tpu.dot_dimension_numbers<[1], [0], [0], [1], [0, 0, 1, 1], [], []>} : vector<8x32xf32>, vector<32x64xf32>, vector<8x64xf32> -> vector<8x64xf32>
    %10 = tpu.iota {dimensions = array<i32: 0>} : vector<8x8xi32>
    %c8_i32 = arith.constant 8 : i32
    %11 = arith.muli %arg1, %c8_i32 : i32
    %12 = vector.broadcast %11 : i32 to vector<8x8xi32>
    %13 = arith.addi %10, %12 : vector<8x8xi32>
    %14 = tpu.iota {dimensions = array<i32: 1>} : vector<8x8xi32>
    %15 = arith.cmpi sle, %14, %13 : vector<8x8xi32>
    %c0_11 = arith.constant 0 : index
    %c0_12 = arith.constant 0 : index
    %c0_13 = arith.constant 0 : index
    %16 = vector.load %arg2[%c0_11, %c0_12, %c0_13] : memref<1x1x8xi32, #tpu.memory_space<vmem>>, vector<1x1x8xi32>
    %17 = vector.shape_cast %16 : vector<1x1x8xi32> to vector<1x8xi32>
    %c0_i32 = arith.constant 0 : i32
    %18 = vector.broadcast %c0_i32 : i32 to vector<1x8xi32>
    %19 = arith.cmpi ne, %17, %18 : vector<1x8xi32>
    %20 = vector.broadcast %19 : vector<1x8xi1> to vector<8x8xi1>
    %21 = arith.andi %15, %20 : vector<8x8xi1>
    %22 = vector.extract_strided_slice %7 {offsets = [0, 0], sizes = [8, 8], strides = [1, 1]} : vector<8x32xf32> to vector<8x8xf32>
    %23 = vector.extract_strided_slice %9 {offsets = [0, 0], sizes = [8, 8], strides = [1, 1]} : vector<8x64xf32> to vector<8x8xf32>
    %24 = vector.extract_strided_slice %9 {offsets = [0, 32], sizes = [8, 8], strides = [1, 1]} : vector<8x64xf32> to vector<8x8xf32>
    %cst_14 = arith.constant dense<0.000000e+00> : vector<8x8xf32>
    %25 = tpu.matmul %22, %23, %cst_14 {dimension_numbers = #tpu.dot_dimension_numbers<[1], [1], [0], [0], [0, 0, 1, 0], [], []>} : vector<8x8xf32>, vector<8x8xf32>, vector<8x8xf32> -> vector<8x8xf32>
    %cst_15 = arith.constant -1.000000e+30 : f32
    %26 = vector.broadcast %cst_15 : f32 to vector<8x8xf32>
    %27 = arith.select %21, %25, %26 : vector<8x8xi1>, vector<8x8xf32>
    %cst_16 = arith.constant dense<0xFF800000> : vector<8xf32>
    %28 = vector.multi_reduction <maximumf>, %27, %cst_16 [1] : vector<8x8xf32> to vector<8xf32>
    %29 = vector.shape_cast %28 : vector<8xf32> to vector<8x1xf32>
    %30 = vector.broadcast %29 : vector<8x1xf32> to vector<8x8xf32>
    %31 = arith.subf %27, %30 : vector<8x8xf32>
    %32 = math.exp %31 : vector<8x8xf32>
    %cst_17 = arith.constant dense<0.000000e+00> : vector<8xf32>
    %33 = vector.multi_reduction <add>, %32, %cst_17 [1] : vector<8x8xf32> to vector<8xf32>
    %34 = vector.shape_cast %33 : vector<8xf32> to vector<8x1xf32>
    %35 = tpu.reciprocal %34 : vector<8x1xf32> -> vector<8x1xf32>
    %36 = vector.broadcast %35 : vector<8x1xf32> to vector<8x8xf32>
    %37 = arith.mulf %32, %36 : vector<8x8xf32>
    %cst_18 = arith.constant dense<0.000000e+00> : vector<8x8xf32>
    %38 = tpu.matmul %37, %24, %cst_18 {dimension_numbers = #tpu.dot_dimension_numbers<[1], [0], [0], [1], [0, 0, 1, 1], [], []>} : vector<8x8xf32>, vector<8x8xf32>, vector<8x8xf32> -> vector<8x8xf32>
    %c0_19 = arith.constant 0 : index
    %c0_20 = arith.constant 0 : index
    %39 = vector.load %arg10[%c0_19, %c0_20] : memref<8x32xf32, #tpu.memory_space<vmem>>, vector<8x8xf32>
    tpu.vector_store %arg10[%c0_19, %c0_20], %38 {strides = array<i32>} : memref<8x32xf32, #tpu.memory_space<vmem>>, vector<8x8xf32>,
    %40 = vector.extract_strided_slice %7 {offsets = [0, 8], sizes = [8, 8], strides = [1, 1]} : vector<8x32xf32> to vector<8x8xf32>
    %41 = vector.extract_strided_slice %9 {offsets = [0, 8], sizes = [8, 8], strides = [1, 1]} : vector<8x64xf32> to vector<8x8xf32>
    %42 = vector.extract_strided_slice %9 {offsets = [0, 40], sizes = [8, 8], strides = [1, 1]} : vector<8x64xf32> to vector<8x8xf32>
    %cst_21 = arith.constant dense<0.000000e+00> : vector<8x8xf32>
    %43 = tpu.matmul %40, %41, %cst_21 {dimension_numbers = #tpu.dot_dimension_numbers<[1], [1], [0], [0], [0, 0, 1, 0], [], []>} : vector<8x8xf32>, vector<8x8xf32>, vector<8x8xf32> -> vector<8x8xf32>
    %cst_22 = arith.constant -1.000000e+30 : f32
    %44 = vector.broadcast %cst_22 : f32 to vector<8x8xf32>
    %45 = arith.select %21, %43, %44 : vector<8x8xi1>, vector<8x8xf32>
    %cst_23 = arith.constant dense<0xFF800000> : vector<8xf32>
    %46 = vector.multi_reduction <maximumf>, %45, %cst_23 [1] : vector<8x8xf32> to vector<8xf32>
    %47 = vector.shape_cast %46 : vector<8xf32> to vector<8x1xf32>
    %48 = vector.broadcast %47 : vector<8x1xf32> to vector<8x8xf32>
    %49 = arith.subf %45, %48 : vector<8x8xf32>
    %50 = math.exp %49 : vector<8x8xf32>
    %cst_24 = arith.constant dense<0.000000e+00> : vector<8xf32>
    %51 = vector.multi_reduction <add>, %50, %cst_24 [1] : vector<8x8xf32> to vector<8xf32>
    %52 = vector.shape_cast %51 : vector<8xf32> to vector<8x1xf32>
    %53 = tpu.reciprocal %52 : vector<8x1xf32> -> vector<8x1xf32>
    %54 = vector.broadcast %53 : vector<8x1xf32> to vector<8x8xf32>
    %55 = arith.mulf %50, %54 : vector<8x8xf32>
    %cst_25 = arith.constant dense<0.000000e+00> : vector<8x8xf32>
    %56 = tpu.matmul %55, %42, %cst_25 {dimension_numbers = #tpu.dot_dimension_numbers<[1], [0], [0], [1], [0, 0, 1, 1], [], []>} : vector<8x8xf32>, vector<8x8xf32>, vector<8x8xf32> -> vector<8x8xf32>
    %c0_26 = arith.constant 0 : index
    %c8 = arith.constant 8 : index
    %57 = vector.load %arg10[%c0_26, %c8] : memref<8x32xf32, #tpu.memory_space<vmem>>, vector<8x8xf32>
    tpu.vector_store %arg10[%c0_26, %c8], %56 {strides = array<i32>} : memref<8x32xf32, #tpu.memory_space<vmem>>, vector<8x8xf32>,
    %58 = vector.extract_strided_slice %7 {offsets = [0, 16], sizes = [8, 8], strides = [1, 1]} : vector<8x32xf32> to vector<8x8xf32>
    %59 = vector.extract_strided_slice %9 {offsets = [0, 16], sizes = [8, 8], strides = [1, 1]} : vector<8x64xf32> to vector<8x8xf32>
    %60 = vector.extract_strided_slice %9 {offsets = [0, 48], sizes = [8, 8], strides = [1, 1]} : vector<8x64xf32> to vector<8x8xf32>
    %cst_27 = arith.constant dense<0.000000e+00> : vector<8x8xf32>
    %61 = tpu.matmul %58, %59, %cst_27 {dimension_numbers = #tpu.dot_dimension_numbers<[1], [1], [0], [0], [0, 0, 1, 0], [], []>} : vector<8x8xf32>, vector<8x8xf32>, vector<8x8xf32> -> vector<8x8xf32>
    %cst_28 = arith.constant -1.000000e+30 : f32
    %62 = vector.broadcast %cst_28 : f32 to vector<8x8xf32>
    %63 = arith.select %21, %61, %62 : vector<8x8xi1>, vector<8x8xf32>
    %cst_29 = arith.constant dense<0xFF800000> : vector<8xf32>
    %64 = vector.multi_reduction <maximumf>, %63, %cst_29 [1] : vector<8x8xf32> to vector<8xf32>
    %65 = vector.shape_cast %64 : vector<8xf32> to vector<8x1xf32>
    %66 = vector.broadcast %65 : vector<8x1xf32> to vector<8x8xf32>
    %67 = arith.subf %63, %66 : vector<8x8xf32>
    %68 = math.exp %67 : vector<8x8xf32>
    %cst_30 = arith.constant dense<0.000000e+00> : vector<8xf32>
    %69 = vector.multi_reduction <add>, %68, %cst_30 [1] : vector<8x8xf32> to vector<8xf32>
    %70 = vector.shape_cast %69 : vector<8xf32> to vector<8x1xf32>
    %71 = tpu.reciprocal %70 : vector<8x1xf32> -> vector<8x1xf32>
    %72 = vector.broadcast %71 : vector<8x1xf32> to vector<8x8xf32>
    %73 = arith.mulf %68, %72 : vector<8x8xf32>
    %cst_31 = arith.constant dense<0.000000e+00> : vector<8x8xf32>
    %74 = tpu.matmul %73, %60, %cst_31 {dimension_numbers = #tpu.dot_dimension_numbers<[1], [0], [0], [1], [0, 0, 1, 1], [], []>} : vector<8x8xf32>, vector<8x8xf32>, vector<8x8xf32> -> vector<8x8xf32>
    %c0_32 = arith.constant 0 : index
    %c16 = arith.constant 16 : index
    %75 = vector.load %arg10[%c0_32, %c16] : memref<8x32xf32, #tpu.memory_space<vmem>>, vector<8x8xf32>
    tpu.vector_store %arg10[%c0_32, %c16], %74 {strides = array<i32>} : memref<8x32xf32, #tpu.memory_space<vmem>>, vector<8x8xf32>,
    %76 = vector.extract_strided_slice %7 {offsets = [0, 24], sizes = [8, 8], strides = [1, 1]} : vector<8x32xf32> to vector<8x8xf32>
    %77 = vector.extract_strided_slice %9 {offsets = [0, 24], sizes = [8, 8], strides = [1, 1]} : vector<8x64xf32> to vector<8x8xf32>
    %78 = vector.extract_strided_slice %9 {offsets = [0, 56], sizes = [8, 8], strides = [1, 1]} : vector<8x64xf32> to vector<8x8xf32>
    %cst_33 = arith.constant dense<0.000000e+00> : vector<8x8xf32>
    %79 = tpu.matmul %76, %77, %cst_33 {dimension_numbers = #tpu.dot_dimension_numbers<[1], [1], [0], [0], [0, 0, 1, 0], [], []>} : vector<8x8xf32>, vector<8x8xf32>, vector<8x8xf32> -> vector<8x8xf32>
    %cst_34 = arith.constant -1.000000e+30 : f32
    %80 = vector.broadcast %cst_34 : f32 to vector<8x8xf32>
    %81 = arith.select %21, %79, %80 : vector<8x8xi1>, vector<8x8xf32>
    %cst_35 = arith.constant dense<0xFF800000> : vector<8xf32>
    %82 = vector.multi_reduction <maximumf>, %81, %cst_35 [1] : vector<8x8xf32> to vector<8xf32>
    %83 = vector.shape_cast %82 : vector<8xf32> to vector<8x1xf32>
    %84 = vector.broadcast %83 : vector<8x1xf32> to vector<8x8xf32>
    %85 = arith.subf %81, %84 : vector<8x8xf32>
    %86 = math.exp %85 : vector<8x8xf32>
    %cst_36 = arith.constant dense<0.000000e+00> : vector<8xf32>
    %87 = vector.multi_reduction <add>, %86, %cst_36 [1] : vector<8x8xf32> to vector<8xf32>
    %88 = vector.shape_cast %87 : vector<8xf32> to vector<8x1xf32>
    %89 = tpu.reciprocal %88 : vector<8x1xf32> -> vector<8x1xf32>
    %90 = vector.broadcast %89 : vector<8x1xf32> to vector<8x8xf32>
    %91 = arith.mulf %86, %90 : vector<8x8xf32>
    %cst_37 = arith.constant dense<0.000000e+00> : vector<8x8xf32>
    %92 = tpu.matmul %91, %78, %cst_37 {dimension_numbers = #tpu.dot_dimension_numbers<[1], [0], [0], [1], [0, 0, 1, 1], [], []>} : vector<8x8xf32>, vector<8x8xf32>, vector<8x8xf32> -> vector<8x8xf32>
    %c0_38 = arith.constant 0 : index
    %c24 = arith.constant 24 : index
    %93 = vector.load %arg10[%c0_38, %c24] : memref<8x32xf32, #tpu.memory_space<vmem>>, vector<8x8xf32>
    tpu.vector_store %arg10[%c0_38, %c24], %92 {strides = array<i32>} : memref<8x32xf32, #tpu.memory_space<vmem>>, vector<8x8xf32>,
    %c0_39 = arith.constant 0 : index
    %c0_40 = arith.constant 0 : index
    %94 = vector.load %arg10[%c0_39, %c0_40] : memref<8x32xf32, #tpu.memory_space<vmem>>, vector<8x32xf32>
    %c0_41 = arith.constant 0 : index
    %c0_42 = arith.constant 0 : index
    %95 = vector.load %arg7[%c0_41, %c0_42] : memref<32x32xf32, #tpu.memory_space<vmem>>, vector<32x32xf32>
    %cst_43 = arith.constant dense<0.000000e+00> : vector<8x32xf32>
    %96 = tpu.matmul %94, %95, %cst_43 {dimension_numbers = #tpu.dot_dimension_numbers<[1], [0], [0], [1], [0, 0, 1, 1], [], []>} : vector<8x32xf32>, vector<32x32xf32>, vector<8x32xf32> -> vector<8x32xf32>
    %c0_44 = arith.constant 0 : index
    %c0_45 = arith.constant 0 : index
    %97 = vector.load %arg8[%c0_44, %c0_45] : memref<1x32xf32, #tpu.memory_space<vmem>>, vector<1x32xf32>
    %98 = vector.broadcast %97 : vector<1x32xf32> to vector<8x32xf32>
    %99 = arith.addf %96, %98 : vector<8x32xf32>
    %c0_46 = arith.constant 0 : index
    %c0_47 = arith.constant 0 : index
    %c0_48 = arith.constant 0 : index
    %100 = vector.load %arg9[%c0_46, %c0_47, %c0_48] : memref<1x8x32xf32, #tpu.memory_space<vmem>>, vector<1x8x32xf32>
    %101 = vector.shape_cast %100 : vector<1x8x32xf32> to vector<8x32xf32>
    %102 = vector.shape_cast %99 : vector<8x32xf32> to vector<1x8x32xf32>
    tpu.vector_store %arg9[%c0_46, %c0_47, %c0_48], %102 {strides = array<i32>} : memref<1x8x32xf32, #tpu.memory_space<vmem>>, vector<1x8x32xf32>,
    return
  }
  func.func @transform_0(%arg0: i32, %arg1: i32) -> (i32, i32, i32) {
    %c0_i32 = arith.constant 0 : i32
    %c0_i32_0 = arith.constant 0 : i32
    %c0_i32_1 = arith.constant 0 : i32
    return %arg0, %c0_i32, %c0_i32_0 : i32, i32, i32
  }
  func.func @transform_1(%arg0: i32, %arg1: i32) -> (i32, i32, i32) {
    %c0_i32 = arith.constant 0 : i32
    %c0_i32_0 = arith.constant 0 : i32
    return %arg0, %arg1, %c0_i32 : i32, i32, i32
  }
  func.func @transform_2(%arg0: i32, %arg1: i32) -> (i32, i32, i32) {
    %c0_i32 = arith.constant 0 : i32
    %c0_i32_0 = arith.constant 0 : i32
    %c0_i32_1 = arith.constant 0 : i32
    return %arg0, %c0_i32, %c0_i32_0 : i32, i32, i32
  }
  func.func @transform_3(%arg0: i32, %arg1: i32) -> (i32, i32) {
    %c0_i32 = arith.constant 0 : i32
    %c0_i32_0 = arith.constant 0 : i32
    %c0_i32_1 = arith.constant 0 : i32
    return %c0_i32, %c0_i32_0 : i32, i32
  }
  func.func @transform_4(%arg0: i32, %arg1: i32) -> (i32, i32) {
    %c0_i32 = arith.constant 0 : i32
    %c0_i32_0 = arith.constant 0 : i32
    %c0_i32_1 = arith.constant 0 : i32
    return %c0_i32, %c0_i32_0 : i32, i32
  }
  func.func @transform_5(%arg0: i32, %arg1: i32) -> (i32, i32) {
    %c0_i32 = arith.constant 0 : i32
    %c0_i32_0 = arith.constant 0 : i32
    %c0_i32_1 = arith.constant 0 : i32
    return %c0_i32, %c0_i32_0 : i32, i32
  }
  func.func @transform_6(%arg0: i32, %arg1: i32) -> (i32, i32) {
    %c0_i32 = arith.constant 0 : i32
    %c0_i32_0 = arith.constant 0 : i32
    %c0_i32_1 = arith.constant 0 : i32
    return %c0_i32, %c0_i32_0 : i32, i32
  }
  func.func @transform_7(%arg0: i32, %arg1: i32) -> (i32, i32, i32) {
    %c0_i32 = arith.constant 0 : i32
    %c0_i32_0 = arith.constant 0 : i32
    return %arg0, %arg1, %c0_i32 : i32, i32, i32
  }
}

</mosaic_0001>

<llo_original>
// kernel: tpu_custom_call.1
$region0: #{tpu_custom_call.1}
  #allocation0 [shape = 'u32[]', space=smem, size = 0x4, offset = 0x4, fixed_abs, tag = 'smem constant byte address 0x4 - core index']
  #allocation1 [shape = 'u32[144,128]{1,0:T(1,128)}', space=vmem, size = 0x12000, scoped, tag = 'internal scratch']
  #allocation2 [shape = 'f32[8,32]{1,0:T(8,128)}', space=vmem, size = 0x1000, scoped, tag = 'scratch operand']
  %s0 = inlined_call_operand.hbm [shape: s32[2,1,8], index: 0, kind: input, shape index: {}]
  %s1 = inlined_call_operand.hbm [shape: f32[2,8,32], index: 1, kind: input, shape index: {}]
  %s2 = inlined_call_operand.hbm [shape: f32[2,8,32], index: 2, kind: input, shape index: {}]
  %s3 = inlined_call_operand.hbm [shape: f32[32,32], index: 3, kind: input, shape index: {}]
  %s4 = inlined_call_operand.hbm [shape: f32[32,64], index: 4, kind: input, shape index: {}]
  %s5 = inlined_call_operand.hbm [shape: f32[32,32], index: 5, kind: input, shape index: {}]
  %s6 = inlined_call_operand.vmem [shape: f32[1,32], index: 6, kind: input, shape index: {}]
  %s7 = inlined_call_operand.hbm [shape: f32[2,8,32], index: 7, kind: output, shape index: {}]
  %s8 = sld [smem:[#allocation0]]
  $region85: #{tpu_custom_call.1} parent=0
    _
  %s10 = ssub.s32 1, %s8
  %s11 = scalar_select 0, %s10, %s8
  $region1: #{tpu_custom_call.1} parent=0
    #allocation3 [shape = 'u8[1024]{0}', space=vmem, size = 0x400, scoped, tag = 'input window, operand 0']
    #allocation4 [shape = 's32[2]{0}', space=sflag, size = 0x8, scoped, tag = 'scoped memory for tpu_custom_call.1']
    #allocation5 [shape = 's32[2]{0}', space=sflag, size = 0x8, scoped, tag = 'scoped memory for tpu_custom_call.1']
    #allocation6 [shape = 'u8[8192]{0}', space=vmem, size = 0x2000, scoped, tag = 'input window, operand 1']
    #allocation7 [shape = 's32[2]{0}', space=sflag, size = 0x8, scoped, tag = 'scoped memory for tpu_custom_call.1']
    #allocation8 [shape = 'u8[8192]{0}', space=vmem, size = 0x2000, scoped, tag = 'input window, operand 2']
    #allocation9 [shape = 'u8[16384]{0}', space=vmem, size = 0x4000, scoped, tag = 'input window, operand 3, single buffered']
    #allocation10 [shape = 's32[1]{0}', space=sflag, size = 0x4, scoped, tag = 'scoped memory for tpu_custom_call.1']
    #allocation11 [shape = 'u8[16384]{0}', space=vmem, size = 0x4000, scoped, tag = 'input window, operand 4, single buffered']
    #allocation12 [shape = 'u8[16384]{0}', space=vmem, size = 0x4000, scoped, tag = 'input window, operand 5, single buffered']
    #allocation13 [shape = 's32[1]{0}', space=sflag, size = 0x4, scoped, tag = 'scoped memory for tpu_custom_call.1']
    #allocation14 [shape = 'u8[8192]{0}', space=vmem, size = 0x2000, scoped, tag = 'output window, operand 0']
    %12 = vsyncpa [#allocation4], 0
    %s13 = scalar_lea.sflag [#allocation4], 1
    %14 = vsyncpa %s13, 0
    %15 = vsyncpa [#allocation7], 0
    %s16 = scalar_lea.sflag [#allocation7], 1
    %17 = vsyncpa %s16, 0
    %18 = vsyncpa [#allocation10], 0
    %19 = vsyncpa [#allocation13], 0
    %20 = vsyncpa [#allocation5], 0
    %s21 = scalar_lea.sflag [#allocation5], 1
    %22 = vsyncpa %s21, 0
    loop: start=0, step=1, limit=4
    $region2: #{tpu_custom_call.1} parent=1 // loop_pre_header
      _
    $region3: #{tpu_custom_call.1} parent=1 // loop_header
      %s24 = sphi 0, %s28
      %p25 = scmp.ge.s32.totalorder %s24, 4
      %s31 = sphi 0, %s43
      %s32 = sphi 0, %s39
      %s33 = sphi 0, %s31
      %s34 = sphi 0, %s32
      %s35 = sphi 0, %s33
      %s36 = sphi 0, %s34
      %s46 = sphi 0, %s48
      %s49 = sphi 0, %s46
      %s50 = sphi 0, %s49
      %s66 = sphi 0, %s50
      %s74 = sphi 0, %s76
      %s77 = sphi 0, %s74
      %s78 = sphi 0, %s77
      %s94 = sphi 0, %s78
      %s100 = sphi 0, %s102
      %s103 = sphi 0, %s100
      %s104 = sphi 0, %s103
      %s120 = sphi 0, %s104
      %s124 = sphi 0, %s124
      %s126 = sphi 0, %s124
      %s127 = sphi 0, %s126
      %s141 = sphi 0, %s127
      %s145 = sphi 0, %s145
      %s147 = sphi 0, %s145
      %s148 = sphi 0, %s147
      %s162 = sphi 0, %s148
      %s166 = sphi 0, %s166
      %s168 = sphi 0, %s166
      %s169 = sphi 0, %s168
      %s183 = sphi 0, %s169
      %s187 = sphi 0, %s187
      %s189 = sphi 0, %s187
      %s190 = sphi 0, %s189
      %s204 = sphi 0, %s190
      %s212 = sphi 0, %s214
      %s215 = sphi 0, %s212
      %s216 = sphi 0, %s215
      %s232 = sphi 0, %s216
    $region4: #{tpu_custom_call.1} parent=1 // loop_header_branch
      %27 = sbr.rel (%p25) target = $region8
    $region5: #{tpu_custom_call.1} parent=1 // loop_body
      %s29 = ssub.s32 %s24, 1
      %s30 = ssub.s32 %s24, 2
      %s37 = sadd.s32 1, %s32
      %p38 = scmp.ge.s32.totalorder %s37, 1
      %s39 = scalar_select %p38, 0, %s37
      %s40 = sadd.s32 1, %s31
      %s41 = scalar_select %p38, %s40, %s31
      %p42 = scmp.ge.s32.totalorder %s41, 2
      %s43 = scalar_select %p42, 0, %s41
      %s44 = ssub.s32 %s31, %s43
      %p45 = scmp.eq.s32.totalorder %s44, 0
      %s47 = sadd.s32 %s46, 1
      %s48 = scalar_select %p45, %s46, %s47
      %p51 = pneg %p45
      %p52 = scmp.eq.s32.totalorder %s24, 1
      %p53 = por %p51, %p52
      %p54 = scmp.ne.s32.totalorder %s46, %s49
      %p55 = scmp.eq.s32.totalorder %s24, 0
      %p56 = por %p54, %p55
      %p57 = scmp.ne.s32.totalorder %s46, %s49
      %p58 = scmp.eq.s32.totalorder %s29, 1
      %p59 = por %p57, %p58
      %p60 = scmp.ne.s32.totalorder %s49, %s50
      %p61 = scmp.eq.s32.totalorder %s29, 0
      %p62 = por %p60, %p61
      %p63 = scmp.ne.s32.totalorder %s49, %s50
      %p64 = scmp.eq.s32.totalorder %s30, 1
      %p65 = por %p63, %p64
      %p67 = scmp.ne.s32.totalorder %s50, %s66
      %p68 = scmp.eq.s32.totalorder %s30, 0
      %p69 = por %p67, %p68
      %s70 = ssub.s32 %s31, %s43
      %s71 = ssub.s32 %s32, %s39
      %s72 = sor.u32 %s70, %s71
      %p73 = scmp.eq.s32.totalorder %s72, 0
      %s75 = sadd.s32 %s74, 1
      %s76 = scalar_select %p73, %s74, %s75
      %p79 = pneg %p73
      %p80 = scmp.eq.s32.totalorder %s24, 1
      %p81 = por %p79, %p80
      %p82 = scmp.ne.s32.totalorder %s74, %s77
      %p83 = scmp.eq.s32.totalorder %s24, 0
      %p84 = por %p82, %p83
      %p85 = scmp.ne.s32.totalorder %s74, %s77
      %p86 = scmp.eq.s32.totalorder %s29, 1
      %p87 = por %p85, %p86
      %p88 = scmp.ne.s32.totalorder %s77, %s78
      %p89 = scmp.eq.s32.totalorder %s29, 0
      %p90 = por %p88, %p89
      %p91 = scmp.ne.s32.totalorder %s77, %s78
      %p92 = scmp.eq.s32.totalorder %s30, 1
      %p93 = por %p91, %p92
      %p95 = scmp.ne.s32.totalorder %s78, %s94
      %p96 = scmp.eq.s32.totalorder %s30, 0
      %p97 = por %p95, %p96
      %s98 = ssub.s32 %s31, %s43
      %p99 = scmp.eq.s32.totalorder %s98, 0
      %s101 = sadd.s32 %s100, 1
      %s102 = scalar_select %p99, %s100, %s101
      %p105 = pneg %p99
      %p106 = scmp.eq.s32.totalorder %s24, 1
      %p107 = por %p105, %p106
      %p108 = scmp.ne.s32.totalorder %s100, %s103
      %p109 = scmp.eq.s32.totalorder %s24, 0
      %p110 = por %p108, %p109
      %p111 = scmp.ne.s32.totalorder %s100, %s103
      %p112 = scmp.eq.s32.totalorder %s29, 1
      %p113 = por %p111, %p112
      %p114 = scmp.ne.s32.totalorder %s103, %s104
      %p115 = scmp.eq.s32.totalorder %s29, 0
      %p116 = por %p114, %p115
      %p117 = scmp.ne.s32.totalorder %s103, %s104
      %p118 = scmp.eq.s32.totalorder %s30, 1
      %p119 = por %p117, %p118
      %p121 = scmp.ne.s32.totalorder %s104, %s120
      %p122 = scmp.eq.s32.totalorder %s30, 0
      %p123 = por %p121, %p122
      %s125 = sadd.s32 %s124, 1
      %p128 = scmp.eq.s32.totalorder %s24, 1
      %p129 = scmp.ne.s32.totalorder %s124, %s126
      %p130 = scmp.eq.s32.totalorder %s24, 0
      %p131 = por %p129, %p130
      %p132 = scmp.ne.s32.totalorder %s124, %s126
      %p133 = scmp.eq.s32.totalorder %s29, 1
      %p134 = por %p132, %p133
      %p135 = scmp.ne.s32.totalorder %s126, %s127
      %p136 = scmp.eq.s32.totalorder %s29, 0
      %p137 = por %p135, %p136
      %p138 = scmp.ne.s32.totalorder %s126, %s127
      %p139 = scmp.eq.s32.totalorder %s30, 1
      %p140 = por %p138, %p139
      %p142 = scmp.ne.s32.totalorder %s127, %s141
      %p143 = scmp.eq.s32.totalorder %s30, 0
      %p144 = por %p142, %p143
      %s146 = sadd.s32 %s145, 1
      %p149 = scmp.eq.s32.totalorder %s24, 1
      %p150 = scmp.ne.s32.totalorder %s145, %s147
      %p151 = scmp.eq.s32.totalorder %s24, 0
      %p152 = por %p150, %p151
      %p153 = scmp.ne.s32.totalorder %s145, %s147
      %p154 = scmp.eq.s32.totalorder %s29, 1
      %p155 = por %p153, %p154
      %p156 = scmp.ne.s32.totalorder %s147, %s148
      %p157 = scmp.eq.s32.totalorder %s29, 0
      %p158 = por %p156, %p157
      %p159 = scmp.ne.s32.totalorder %s147, %s148
      %p160 = scmp.eq.s32.totalorder %s30, 1
      %p161 = por %p159, %p160
      %p163 = scmp.ne.s32.totalorder %s148, %s162
      %p164 = scmp.eq.s32.totalorder %s30, 0
      %p165 = por %p163, %p164
      %s167 = sadd.s32 %s166, 1
      %p170 = scmp.eq.s32.totalorder %s24, 1
      %p171 = scmp.ne.s32.totalorder %s166, %s168
      %p172 = scmp.eq.s32.totalorder %s24, 0
      %p173 = por %p171, %p172
      %p174 = scmp.ne.s32.totalorder %s166, %s168
      %p175 = scmp.eq.s32.totalorder %s29, 1
      %p176 = por %p174, %p175
      %p177 = scmp.ne.s32.totalorder %s168, %s169
      %p178 = scmp.eq.s32.totalorder %s29, 0
      %p179 = por %p177, %p178
      %p180 = scmp.ne.s32.totalorder %s168, %s169
      %p181 = scmp.eq.s32.totalorder %s30, 1
      %p182 = por %p180, %p181
      %p184 = scmp.ne.s32.totalorder %s169, %s183
      %p185 = scmp.eq.s32.totalorder %s30, 0
      %p186 = por %p184, %p185
      %s188 = sadd.s32 %s187, 1
      %p191 = scmp.eq.s32.totalorder %s24, 1
      %p192 = scmp.ne.s32.totalorder %s187, %s189
      %p193 = scmp.eq.s32.totalorder %s24, 0
      %p194 = por %p192, %p193
      %p195 = scmp.ne.s32.totalorder %s187, %s189
      %p196 = scmp.eq.s32.totalorder %s29, 1
      %p197 = por %p195, %p196
      %p198 = scmp.ne.s32.totalorder %s189, %s190
      %p199 = scmp.eq.s32.totalorder %s29, 0
      %p200 = por %p198, %p199
      %p201 = scmp.ne.s32.totalorder %s189, %s190
      %p202 = scmp.eq.s32.totalorder %s30, 1
      %p203 = por %p201, %p202
      %p205 = scmp.ne.s32.totalorder %s190, %s204
      %p206 = scmp.eq.s32.totalorder %s30, 0
      %p207 = por %p205, %p206
      %s208 = ssub.s32 %s31, %s43
      %s209 = ssub.s32 %s32, %s39
      %s210 = sor.u32 %s208, %s209
      %p211 = scmp.eq.s32.totalorder %s210, 0
      %s213 = sadd.s32 %s212, 1
      %s214 = scalar_select %p211, %s212, %s213
      %p217 = pneg %p211
      %p218 = scmp.eq.s32.totalorder %s24, 1
      %p219 = por %p217, %p218
      %p220 = scmp.ne.s32.totalorder %s212, %s215
      %p221 = scmp.eq.s32.totalorder %s24, 0
      %p222 = por %p220, %p221
      %p223 = scmp.ne.s32.totalorder %s212, %s215
      %p224 = scmp.eq.s32.totalorder %s29, 1
      %p225 = por %p223, %p224
      %p226 = scmp.ne.s32.totalorder %s215, %s216
      %p227 = scmp.eq.s32.totalorder %s29, 0
      %p228 = por %p226, %p227
      %p229 = scmp.ne.s32.totalorder %s215, %s216
      %p230 = scmp.eq.s32.totalorder %s30, 1
      %p231 = por %p229, %p230
      %p233 = scmp.ne.s32.totalorder %s216, %s232
      %p234 = scmp.eq.s32.totalorder %s30, 0
      %p235 = por %p233, %p234
      %p236 = scmp.le.s32.totalorder 1, %s24
      %p237 = scmp.lt.s32.totalorder %s24, 3
      %p238 = pnand %p236, %p237
      %p239 = pneg %p238
      // Predicated region
      $region9: #{tpu_custom_call.1} parent=5 // pred_check
        _
      $region10: #{tpu_custom_call.1} parent=5 // pred_check_branch
        %241 = sbr.rel (%p238) target = $region12
      $region11: #{tpu_custom_call.1} parent=5 // pred_region
        %s242 = ssub.s32 %s24, 1
        // Predicated region
        $region13: #{tpu_custom_call.1} parent=11 // pred_check
          %p243 = pneg %p137
        $region14: #{tpu_custom_call.1} parent=11 // pred_check_branch
          %245 = sbr.rel (%p243) target = $region16
        $region15: #{tpu_custom_call.1} parent=11 // pred_region
          %s247 = ssub.s32 512, 512
          %248 = vsyncadd [#allocation10], %s247
          %s249 = sshll.u32 [#allocation9], 4
          %s250 = int_to_ptr.vmem [resolvable:$true] %s249
          %255 = dma.hbm_to_vmem [thread:$0]  %s3, 512, %s250, [#allocation10], 128, 128, 8
        $region16: #{tpu_custom_call.1} parent=11 // pred_fallthru
          _
        // Predicated region
        $region17: #{tpu_custom_call.1} parent=11 // pred_check
          %p256 = pneg %p158
        $region18: #{tpu_custom_call.1} parent=11 // pred_check_branch
          %258 = sbr.rel (%p256) target = $region20
        $region19: #{tpu_custom_call.1} parent=11 // pred_region
          %s260 = ssub.s32 512, 512
          %261 = vsyncadd [#allocation10], %s260
          %s262 = sshll.u32 [#allocation11], 4
          %s263 = int_to_ptr.vmem [resolvable:$true] %s262
          %268 = dma.hbm_to_vmem [thread:$0]  %s4, 512, %s263, [#allocation10], 128, 128, 8
        $region20: #{tpu_custom_call.1} parent=11 // pred_fallthru
          _
        // Predicated region
        $region21: #{tpu_custom_call.1} parent=11 // pred_check
          %p269 = pneg %p179
        $region22: #{tpu_custom_call.1} parent=11 // pred_check_branch
          %271 = sbr.rel (%p269) target = $region24
        $region23: #{tpu_custom_call.1} parent=11 // pred_region
          %s273 = ssub.s32 512, 512
          %274 = vsyncadd [#allocation13], %s273
          %s275 = sshll.u32 [#allocation12], 4
          %s276 = int_to_ptr.vmem [resolvable:$true] %s275
          %281 = dma.hbm_to_vmem [thread:$0]  %s5, 512, %s276, [#allocation13], 128, 128, 8
        $region24: #{tpu_custom_call.1} parent=11 // pred_fallthru
          _
        // Predicated region
        $region25: #{tpu_custom_call.1} parent=11 // pred_check
          %p282 = pneg %p200
        $region26: #{tpu_custom_call.1} parent=11 // pred_check_branch
          %284 = sbr.rel (%p282) target = $region28
        $region27: #{tpu_custom_call.1} parent=11 // pred_region
          _
        $region28: #{tpu_custom_call.1} parent=11 // pred_fallthru
          _
      $region12: #{tpu_custom_call.1} parent=5 // pred_fallthru
        _
      %p285 = scmp.lt.s32.totalorder %s24, 2
      // Predicated region
      $region29: #{tpu_custom_call.1} parent=5 // pred_check
        %p286 = pneg %p285
      $region30: #{tpu_custom_call.1} parent=5 // pred_check_branch
        %288 = sbr.rel (%p286) target = $region32
      $region31: #{tpu_custom_call.1} parent=5 // pred_region
        // Predicated region
        $region33: #{tpu_custom_call.1} parent=31 // pred_check
          %p289 = pneg %p56
        $region34: #{tpu_custom_call.1} parent=31 // pred_check_branch
          %291 = sbr.rel (%p289) target = $region36
        $region35: #{tpu_custom_call.1} parent=31 // pred_region
          %s292 = sand.u32 %s46, 1
          %s293 = scalar_lea.sflag [#allocation4], %s292
          %s294 = sand.u32 %s46, 1
          %s295 = scalar_lea.vmem [#allocation3], %s294
          %s297 = ssub.s32 16, 16
          %298 = vsyncadd %s293, %s297
          %s299 = smul.addr %s31, 16
          %s300 = scalar_lea.hbm %s0, %s299
          %s302 = sshll.u32 %s295, 4
          %s303 = int_to_ptr.vmem [resolvable:$true] %s302
          %305 = dma.hbm_to_vmem [thread:$0]  %s300, 16, %s303, %s293
        $region36: #{tpu_custom_call.1} parent=31 // pred_fallthru
          _
        // Predicated region
        $region37: #{tpu_custom_call.1} parent=31 // pred_check
          %p306 = pneg %p84
        $region38: #{tpu_custom_call.1} parent=31 // pred_check_branch
          %308 = sbr.rel (%p306) target = $region40
        $region39: #{tpu_custom_call.1} parent=31 // pred_region
          %s309 = sand.u32 %s24, 1
          %s310 = scalar_lea.sflag [#allocation7], %s309
          %s311 = sand.u32 %s74, 1
          %s312 = smul.addr %s311, 8
          %s313 = scalar_lea.vmem [#allocation6], %s312
          %s315 = ssub.s32 128, 128
          %316 = vsyncadd %s310, %s315
          %s317 = sadd.s32 %s32, %s31
          %s318 = smul.addr %s317, 128
          %s319 = scalar_lea.hbm %s1, %s318
          %s321 = sshll.u32 %s313, 4
          %s322 = int_to_ptr.vmem [resolvable:$true] %s321
          %324 = dma.hbm_to_vmem [thread:$0]  %s319, 128, %s322, %s310
        $region40: #{tpu_custom_call.1} parent=31 // pred_fallthru
          _
        // Predicated region
        $region41: #{tpu_custom_call.1} parent=31 // pred_check
          %p325 = pneg %p110
        $region42: #{tpu_custom_call.1} parent=31 // pred_check_branch
          %327 = sbr.rel (%p325) target = $region44
        $region43: #{tpu_custom_call.1} parent=31 // pred_region
          %s328 = sand.u32 %s24, 1
          %s329 = scalar_lea.sflag [#allocation7], %s328
          %s330 = sand.u32 %s100, 1
          %s331 = smul.addr %s330, 8
          %s332 = scalar_lea.vmem [#allocation8], %s331
          %s334 = ssub.s32 128, 128
          %335 = vsyncadd %s329, %s334
          %s336 = smul.addr %s31, 128
          %s337 = scalar_lea.hbm %s2, %s336
          %s339 = sshll.u32 %s332, 4
          %s340 = int_to_ptr.vmem [resolvable:$true] %s339
          %342 = dma.hbm_to_vmem [thread:$0]  %s337, 128, %s340, %s329
        $region44: #{tpu_custom_call.1} parent=31 // pred_fallthru
          _
      $region32: #{tpu_custom_call.1} parent=5 // pred_fallthru
        _
      %p343 = scmp.le.s32.totalorder 1, %s24
      %p344 = scmp.lt.s32.totalorder %s24, 3
      %p345 = pnand %p343, %p344
      %p346 = pneg %p345
      // Predicated region
      $region45: #{tpu_custom_call.1} parent=5 // pred_check
        _
      $region46: #{tpu_custom_call.1} parent=5 // pred_check_branch
        %348 = sbr.rel (%p345) target = $region48
      $region47: #{tpu_custom_call.1} parent=5 // pred_region
        %s349 = ssub.s32 %s24, 1
        %s350 = sand.u32 %s49, 1
        %s351 = scalar_lea.sflag [#allocation4], %s350
        %s352 = sand.u32 %s49, 1
        %s353 = scalar_lea.vmem [#allocation3], %s352
        // Predicated region
        $region49: #{tpu_custom_call.1} parent=47 // pred_check
          %p354 = pneg %p62
        $region50: #{tpu_custom_call.1} parent=47 // pred_check_branch
          %356 = sbr.rel (%p354) target = $region52
        $region51: #{tpu_custom_call.1} parent=47 // pred_region
          %357 = dma.done %s351, 16
        $region52: #{tpu_custom_call.1} parent=47 // pred_fallthru
          _
        %s358 = sand.u32 %s29, 1
        %s359 = scalar_lea.sflag [#allocation7], %s358
        %s360 = sand.u32 %s77, 1
        %s361 = smul.addr %s360, 8
        %s362 = scalar_lea.vmem [#allocation6], %s361
        // Predicated region
        $region53: #{tpu_custom_call.1} parent=47 // pred_check
          %p363 = pneg %p90
        $region54: #{tpu_custom_call.1} parent=47 // pred_check_branch
          %365 = sbr.rel (%p363) target = $region56
        $region55: #{tpu_custom_call.1} parent=47 // pred_region
          %366 = dma.done %s359, 128
        $region56: #{tpu_custom_call.1} parent=47 // pred_fallthru
          _
        %s367 = sand.u32 %s29, 1
        %s368 = scalar_lea.sflag [#allocation7], %s367
        %s369 = sand.u32 %s103, 1
        %s370 = smul.addr %s369, 8
        %s371 = scalar_lea.vmem [#allocation8], %s370
        // Predicated region
        $region57: #{tpu_custom_call.1} parent=47 // pred_check
          %p372 = pneg %p116
        $region58: #{tpu_custom_call.1} parent=47 // pred_check_branch
          %374 = sbr.rel (%p372) target = $region60
        $region59: #{tpu_custom_call.1} parent=47 // pred_region
          %375 = dma.done %s368, 128
        $region60: #{tpu_custom_call.1} parent=47 // pred_fallthru
          _
        // Predicated region
        $region61: #{tpu_custom_call.1} parent=47 // pred_check
          %p376 = pneg %p137
        $region62: #{tpu_custom_call.1} parent=47 // pred_check_branch
          %378 = sbr.rel (%p376) target = $region64
        $region63: #{tpu_custom_call.1} parent=47 // pred_region
          %379 = dma.done [#allocation10], 512
        $region64: #{tpu_custom_call.1} parent=47 // pred_fallthru
          _
        // Predicated region
        $region65: #{tpu_custom_call.1} parent=47 // pred_check
          %p380 = pneg %p158
        $region66: #{tpu_custom_call.1} parent=47 // pred_check_branch
          %382 = sbr.rel (%p380) target = $region68
        $region67: #{tpu_custom_call.1} parent=47 // pred_region
          %383 = dma.done [#allocation10], 512
        $region68: #{tpu_custom_call.1} parent=47 // pred_fallthru
          _
        // Predicated region
        $region69: #{tpu_custom_call.1} parent=47 // pred_check
          %p384 = pneg %p179
        $region70: #{tpu_custom_call.1} parent=47 // pred_check_branch
          %386 = sbr.rel (%p384) target = $region72
        $region71: #{tpu_custom_call.1} parent=47 // pred_region
          %387 = dma.done [#allocation13], 512
        $region72: #{tpu_custom_call.1} parent=47 // pred_fallthru
          _
        %s388 = sand.u32 %s49, 1
        %s389 = scalar_lea.sflag [#allocation4], %s388
        %s390 = sand.u32 %s49, 1
        %s391 = scalar_lea.vmem [#allocation3], %s390
        %p392 = pneg %p62
        %p393 = pneg %p59
        %s394 = sand.u32 %s29, 1
        %s395 = scalar_lea.sflag [#allocation7], %s394
        %s396 = sand.u32 %s77, 1
        %s397 = smul.addr %s396, 8
        %s398 = scalar_lea.vmem [#allocation6], %s397
        %p399 = pneg %p90
        %p400 = pneg %p87
        %s401 = sand.u32 %s29, 1
        %s402 = scalar_lea.sflag [#allocation7], %s401
        %s403 = sand.u32 %s103, 1
        %s404 = smul.addr %s403, 8
        %s405 = scalar_lea.vmem [#allocation8], %s404
        %p406 = pneg %p116
        %p407 = pneg %p113
        %p408 = pneg %p137
        %p409 = pneg %p134
        %p410 = pneg %p158
        %p411 = pneg %p155
        %p412 = pneg %p179
        %p413 = pneg %p176
        %p414 = pneg %p200
        %p415 = pneg %p197
        %p416 = pneg %p228
        %p417 = pneg %p225
        %s418 = sand.u32 %s215, 1
        %s419 = scalar_lea.sflag [#allocation5], %s418
        %s420 = sand.u32 %s215, 1
        %s421 = smul.addr %s420, 8
        %s422 = scalar_lea.vmem [#allocation14], %s421
        %v423 = vld [vmem:[%s362] sm:$0xff]
        %v424 = vld [vmem:[%s371] sm:$0xff]
        %v425 = vld [vmem:[#allocation9] sm:$0xff]
        %v426 = vld [vmem:[#allocation9 + $0x8] sm:$0xff]
        %v427 = vld [vmem:[#allocation9 + $0x10] sm:$0xff]
        %v428 = vld [vmem:[#allocation9 + $0x18] sm:$0xff]
        %vm429 = vcmask 261120
        %v431 = vsel %vm429, %v423, 0
        %433 = vmatprep.subr.mxu0 0.0
        %434 = vmatpush1.msra.mxu0 0.0
        %435 = vmatprep.subr.mxu0 0.0
        %436 = vmatpush1.msra.mxu0 0.0
        %437 = vmatprep.subr.mxu0 0.0
        %438 = vmatpush1.msra.mxu0 0.0
        %439 = vmatprep.subr.mxu0 0.0
        %440 = vmatpush1.msra.mxu0 0.0
        %441 = vmatprep.subr.mxu0 0.0
        %442 = vmatpush1.msra.mxu0 0.0
        %443 = vmatprep.subr.mxu0 0.0
        %444 = vmatpush1.msra.mxu0 0.0
        %445 = vmatprep.subr.mxu0 0.0
        %446 = vmatpush1.msra.mxu0 0.0
        %447 = vmatprep.subr.mxu0 0.0
        %448 = vmatpush1.msra.mxu0 0.0
        %449 = vmatprep.subr.mxu0 0.0
        %450 = vmatpush1.msra.mxu0 0.0
        %451 = vmatprep.subr.mxu0 0.0
        %452 = vmatpush1.msra.mxu0 0.0
        %453 = vmatprep.subr.mxu0 0.0
        %454 = vmatpush1.msra.mxu0 0.0
        %455 = vmatprep.subr.mxu0 0.0
        %456 = vmatpush1.msra.mxu0 0.0
        %457 = vmatprep.subr.mxu0 0.0
        %458 = vmatpush1.msra.mxu0 %v428
        %459 = vmatprep.subr.mxu0 0.0
        %460 = vmatpush1.msra.mxu0 %v427
        %461 = vmatprep.subr.mxu0 0.0
        %462 = vmatpush1.msra.mxu0 %v426
        %463 = vmatprep.subr.mxu0 0.0
        %464 = vmatpush1.msra.mxu0 %v425
        %465 = vmatprep.subr.mxu0 0.0
        %466 = vmatpush2.msra.mxu0 0.0
        %467 = vmatprep.subr.mxu0 0.0
        %468 = vmatpush2.msra.mxu0 0.0
        %469 = vmatprep.subr.mxu0 0.0
        %470 = vmatpush2.msra.mxu0 0.0
        %471 = vmatprep.subr.mxu0 0.0
        %472 = vmatpush2.msra.mxu0 0.0
        %473 = vmatprep.subr.mxu0 0.0
        %474 = vmatpush2.msra.mxu0 0.0
        %475 = vmatprep.subr.mxu0 0.0
        %476 = vmatpush2.msra.mxu0 0.0
        %477 = vmatprep.subr.mxu0 0.0
        %478 = vmatpush2.msra.mxu0 0.0
        %479 = vmatprep.subr.mxu0 0.0
        %480 = vmatpush2.msra.mxu0 0.0
        %481 = vmatprep.subr.mxu0 0.0
        %482 = vmatpush2.msra.mxu0 0.0
        %483 = vmatprep.subr.mxu0 0.0
        %484 = vmatpush2.msra.mxu0 0.0
        %485 = vmatprep.subr.mxu0 0.0
        %486 = vmatpush2.msra.mxu0 0.0
        %487 = vmatprep.subr.mxu0 0.0
        %488 = vmatpush2.msra.mxu0 0.0
        %489 = vmatprep.subr.mxu0 0.0
        %490 = vmatpush2.msra.mxu0 0.0
        %491 = vmatprep.subr.mxu0 0.0
        %492 = vmatpush2.msra.mxu0 0.0
        %493 = vmatprep.subr.mxu0 0.0
        %494 = vmatpush2.msra.mxu0 0.0
        %495 = vmatprep.subr.mxu0 0.0
        %496 = vmatpush2.msra.mxu0 0.0
        %497 = vmatprep.mubr.f32.mxu0 0.0
        %498 = vmatmul.mubr.f32.gmra.mxu0 %v431
        %v499 = vpop.f32.mrf.mxu0
        %v500 = vadd.f32 0.0, %v499
        %v501 = vpop.f32.mrf.mxu0
        %502 = vdwg.mxu0
        %v503 = vmul.f32 %v500, 0.35355338
        %v504 = vld [vmem:[#allocation11] sm:$0xff]
        %v505 = vld [vmem:[#allocation11 + $0x8] sm:$0xff]
        %v506 = vld [vmem:[#allocation11 + $0x10] sm:$0xff]
        %v507 = vld [vmem:[#allocation11 + $0x18] sm:$0xff]
        %v509 = vsel %vm429, %v424, 0
        %511 = vmatprep.subr.mxu0 0.0
        %512 = vmatpush1.msra.mxu0 0.0
        %513 = vmatprep.subr.mxu0 0.0
        %514 = vmatpush1.msra.mxu0 0.0
        %515 = vmatprep.subr.mxu0 0.0
        %516 = vmatpush1.msra.mxu0 0.0
        %517 = vmatprep.subr.mxu0 0.0
        %518 = vmatpush1.msra.mxu0 0.0
        %519 = vmatprep.subr.mxu0 0.0
        %520 = vmatpush1.msra.mxu0 0.0
        %521 = vmatprep.subr.mxu0 0.0
        %522 = vmatpush1.msra.mxu0 0.0
        %523 = vmatprep.subr.mxu0 0.0
        %524 = vmatpush1.msra.mxu0 0.0
        %525 = vmatprep.subr.mxu0 0.0
        %526 = vmatpush1.msra.mxu0 0.0
        %527 = vmatprep.subr.mxu0 0.0
        %528 = vmatpush1.msra.mxu0 0.0
        %529 = vmatprep.subr.mxu0 0.0
        %530 = vmatpush1.msra.mxu0 0.0
        %531 = vmatprep.subr.mxu0 0.0
        %532 = vmatpush1.msra.mxu0 0.0
        %533 = vmatprep.subr.mxu0 0.0
        %534 = vmatpush1.msra.mxu0 0.0
        %535 = vmatprep.subr.mxu0 0.0
        %536 = vmatpush1.msra.mxu0 %v507
        %537 = vmatprep.subr.mxu0 0.0
        %538 = vmatpush1.msra.mxu0 %v506
        %539 = vmatprep.subr.mxu0 0.0
        %540 = vmatpush1.msra.mxu0 %v505
        %541 = vmatprep.subr.mxu0 0.0
        %542 = vmatpush1.msra.mxu0 %v504
        %543 = vmatprep.subr.mxu0 0.0
        %544 = vmatpush2.msra.mxu0 0.0
        %545 = vmatprep.subr.mxu0 0.0
        %546 = vmatpush2.msra.mxu0 0.0
        %547 = vmatprep.subr.mxu0 0.0
        %548 = vmatpush2.msra.mxu0 0.0
        %549 = vmatprep.subr.mxu0 0.0
        %550 = vmatpush2.msra.mxu0 0.0
        %551 = vmatprep.subr.mxu0 0.0
        %552 = vmatpush2.msra.mxu0 0.0
        %553 = vmatprep.subr.mxu0 0.0
        %554 = vmatpush2.msra.mxu0 0.0
        %555 = vmatprep.subr.mxu0 0.0
        %556 = vmatpush2.msra.mxu0 0.0
        %557 = vmatprep.subr.mxu0 0.0
        %558 = vmatpush2.msra.mxu0 0.0
        %559 = vmatprep.subr.mxu0 0.0
        %560 = vmatpush2.msra.mxu0 0.0
        %561 = vmatprep.subr.mxu0 0.0
        %562 = vmatpush2.msra.mxu0 0.0
        %563 = vmatprep.subr.mxu0 0.0
        %564 = vmatpush2.msra.mxu0 0.0
        %565 = vmatprep.subr.mxu0 0.0
        %566 = vmatpush2.msra.mxu0 0.0
        %567 = vmatprep.subr.mxu0 0.0
        %568 = vmatpush2.msra.mxu0 0.0
        %569 = vmatprep.subr.mxu0 0.0
        %570 = vmatpush2.msra.mxu0 0.0
        %571 = vmatprep.subr.mxu0 0.0
        %572 = vmatpush2.msra.mxu0 0.0
        %573 = vmatprep.subr.mxu0 0.0
        %574 = vmatpush2.msra.mxu0 0.0
        %575 = vmatprep.mubr.f32.mxu0 0.0
        %576 = vmatmul.mubr.f32.gmra.mxu0 %v509
        %v577 = vpop.f32.mrf.mxu0
        %v578 = vadd.f32 0.0, %v577
        %v579 = vpop.f32.mrf.mxu0
        %580 = vdwg.mxu0
        %v581 = vlaneseq
        %v582 = vshrl.u32 %v581, 7
        %s583 = smul.u32 %s34, 8
        %v584 = vstv %s583
        %v585 = vadd.s32 %v582, %v584
        %v586 = vlaneseq
        %v587 = vand.u32 %v586, 127
        %vm588 = vcmp.le.s32.totalorder %v587, %v585
        %v589 = vld [vmem:[%s353] sm:$0x1]
        %vm590 = vcmp.ne.s32.totalorder %v589, 0
        %v591 = vsel %vm590, 1, 0
        %v592 = vlaneseq
        %v593 = vshrl.u32 %v592, 7
        %v594 = vsub.s32 0, %v593
        %v595 = vrot.slane %v591, %v594
        %vm596 = vcmp.eq.s32.totalorder %v595, 1
        %vm597 = vmand %vm588, %vm596
        %vm598 = vcmask 64512
        %v600 = vsel %vm598, %v503, 0
        %v603 = vsel %vm598, %v578, 0
        %605 = vmatprep.subr.mxu0 0.0
        %606 = vmatpush1.xpose.msra.mxu0 0.0
        %607 = vmatprep.subr.mxu0 0.0
        %608 = vmatpush1.xpose.msra.mxu0 0.0
        %609 = vmatprep.subr.mxu0 0.0
        %610 = vmatpush1.xpose.msra.mxu0 0.0
        %611 = vmatprep.subr.mxu0 0.0
        %612 = vmatpush1.xpose.msra.mxu0 0.0
        %613 = vmatprep.subr.mxu0 0.0
        %614 = vmatpush1.xpose.msra.mxu0 0.0
        %615 = vmatprep.subr.mxu0 0.0
        %616 = vmatpush1.xpose.msra.mxu0 0.0
        %617 = vmatprep.subr.mxu0 0.0
        %618 = vmatpush1.xpose.msra.mxu0 0.0
        %619 = vmatprep.subr.mxu0 0.0
        %620 = vmatpush1.xpose.msra.mxu0 0.0
        %621 = vmatprep.subr.mxu0 0.0
        %622 = vmatpush1.xpose.msra.mxu0 0.0
        %623 = vmatprep.subr.mxu0 0.0
        %624 = vmatpush1.xpose.msra.mxu0 0.0
        %625 = vmatprep.subr.mxu0 0.0
        %626 = vmatpush1.xpose.msra.mxu0 0.0
        %627 = vmatprep.subr.mxu0 0.0
        %628 = vmatpush1.xpose.msra.mxu0 0.0
        %629 = vmatprep.subr.mxu0 0.0
        %630 = vmatpush1.xpose.msra.mxu0 0.0
        %631 = vmatprep.subr.mxu0 0.0
        %632 = vmatpush1.xpose.msra.mxu0 0.0
        %633 = vmatprep.subr.mxu0 0.0
        %634 = vmatpush1.xpose.msra.mxu0 0.0
        %635 = vmatprep.subr.mxu0 0.0
        %636 = vmatpush1.xpose.msra.mxu0 %v603
        %637 = vmatprep.subr.mxu0 0.0
        %638 = vmatpush2.xpose.msra.mxu0 0.0
        %639 = vmatprep.subr.mxu0 0.0
        %640 = vmatpush2.xpose.msra.mxu0 0.0
        %641 = vmatprep.subr.mxu0 0.0
        %642 = vmatpush2.xpose.msra.mxu0 0.0
        %643 = vmatprep.subr.mxu0 0.0
        %644 = vmatpush2.xpose.msra.mxu0 0.0
        %645 = vmatprep.subr.mxu0 0.0
        %646 = vmatpush2.xpose.msra.mxu0 0.0
        %647 = vmatprep.subr.mxu0 0.0
        %648 = vmatpush2.xpose.msra.mxu0 0.0
        %649 = vmatprep.subr.mxu0 0.0
        %650 = vmatpush2.xpose.msra.mxu0 0.0
        %651 = vmatprep.subr.mxu0 0.0
        %652 = vmatpush2.xpose.msra.mxu0 0.0
        %653 = vmatprep.subr.mxu0 0.0
        %654 = vmatpush2.xpose.msra.mxu0 0.0
        %655 = vmatprep.subr.mxu0 0.0
        %656 = vmatpush2.xpose.msra.mxu0 0.0
        %657 = vmatprep.subr.mxu0 0.0
        %658 = vmatpush2.xpose.msra.mxu0 0.0
        %659 = vmatprep.subr.mxu0 0.0
        %660 = vmatpush2.xpose.msra.mxu0 0.0
        %661 = vmatprep.subr.mxu0 0.0
        %662 = vmatpush2.xpose.msra.mxu0 0.0
        %663 = vmatprep.subr.mxu0 0.0
        %664 = vmatpush2.xpose.msra.mxu0 0.0
        %665 = vmatprep.subr.mxu0 0.0
        %666 = vmatpush2.xpose.msra.mxu0 0.0
        %667 = vmatprep.subr.mxu0 0.0
        %668 = vmatpush2.xpose.msra.mxu0 0.0
        %669 = vmatprep.mubr.f32.mxu0 0.0
        %670 = vmatmul.mubr.f32.gmra.mxu0 %v600
        %v671 = vpop.f32.mrf.mxu0
        %v672 = vadd.f32 0.0, %v671
        %v673 = vpop.f32.mrf.mxu0
        %674 = vdwg.mxu0
        %v675 = vsel %vm597, %v672, -1e+30
        %v676 = vsel %vm598, %v675, -inf
        %677 = vmax.xlane.f32.xlu0 %v676
        %v678 = vpop.xlane.xlu0 %677
        %v679 = vsub.f32 %v675, %v678
        %v680 = vmul.f32 %v679, 1.442695
        %v681 = vpow.pop %v680
        %v682 = vsel %vm598, %v681, 0.0
        %683 = vadd.xlane.f32.xlu0 %v682
        %v684 = vpop.xlane.xlu0 %683
        %v685 = vrcp.pop %v684
        %v686 = vmul.f32 %v681, %v685
        %687 = vrot.lane.b32.xlu0 %v578, 96
        %v688 = vpop.permute.xlu0 %687
        %v691 = vsel %vm598, %v686, 0
        %693 = vmatprep.subr.mxu0 0.0
        %694 = vmatpush1.msra.mxu0 0.0
        %695 = vmatprep.subr.mxu0 0.0
        %696 = vmatpush1.msra.mxu0 0.0
        %697 = vmatprep.subr.mxu0 0.0
        %698 = vmatpush1.msra.mxu0 0.0
        %699 = vmatprep.subr.mxu0 0.0
        %700 = vmatpush1.msra.mxu0 0.0
        %701 = vmatprep.subr.mxu0 0.0
        %702 = vmatpush1.msra.mxu0 0.0
        %703 = vmatprep.subr.mxu0 0.0
        %704 = vmatpush1.msra.mxu0 0.0
        %705 = vmatprep.subr.mxu0 0.0
        %706 = vmatpush1.msra.mxu0 0.0
        %707 = vmatprep.subr.mxu0 0.0
        %708 = vmatpush1.msra.mxu0 0.0
        %709 = vmatprep.subr.mxu0 0.0
        %710 = vmatpush1.msra.mxu0 0.0
        %711 = vmatprep.subr.mxu0 0.0
        %712 = vmatpush1.msra.mxu0 0.0
        %713 = vmatprep.subr.mxu0 0.0
        %714 = vmatpush1.msra.mxu0 0.0
        %715 = vmatprep.subr.mxu0 0.0
        %716 = vmatpush1.msra.mxu0 0.0
        %717 = vmatprep.subr.mxu0 0.0
        %718 = vmatpush1.msra.mxu0 0.0
        %719 = vmatprep.subr.mxu0 0.0
        %720 = vmatpush1.msra.mxu0 0.0
        %721 = vmatprep.subr.mxu0 0.0
        %722 = vmatpush1.msra.mxu0 0.0
        %723 = vmatprep.subr.mxu0 0.0
        %724 = vmatpush1.msra.mxu0 %v688
        %725 = vmatprep.subr.mxu0 0.0
        %726 = vmatpush2.msra.mxu0 0.0
        %727 = vmatprep.subr.mxu0 0.0
        %728 = vmatpush2.msra.mxu0 0.0
        %729 = vmatprep.subr.mxu0 0.0
        %730 = vmatpush2.msra.mxu0 0.0
        %731 = vmatprep.subr.mxu0 0.0
        %732 = vmatpush2.msra.mxu0 0.0
        %733 = vmatprep.subr.mxu0 0.0
        %734 = vmatpush2.msra.mxu0 0.0
        %735 = vmatprep.subr.mxu0 0.0
        %736 = vmatpush2.msra.mxu0 0.0
        %737 = vmatprep.subr.mxu0 0.0
        %738 = vmatpush2.msra.mxu0 0.0
        %739 = vmatprep.subr.mxu0 0.0
        %740 = vmatpush2.msra.mxu0 0.0
        %741 = vmatprep.subr.mxu0 0.0
        %742 = vmatpush2.msra.mxu0 0.0
        %743 = vmatprep.subr.mxu0 0.0
        %744 = vmatpush2.msra.mxu0 0.0
        %745 = vmatprep.subr.mxu0 0.0
        %746 = vmatpush2.msra.mxu0 0.0
        %747 = vmatprep.subr.mxu0 0.0
        %748 = vmatpush2.msra.mxu0 0.0
        %749 = vmatprep.subr.mxu0 0.0
        %750 = vmatpush2.msra.mxu0 0.0
        %751 = vmatprep.subr.mxu0 0.0
        %752 = vmatpush2.msra.mxu0 0.0
        %753 = vmatprep.subr.mxu0 0.0
        %754 = vmatpush2.msra.mxu0 0.0
        %755 = vmatprep.subr.mxu0 0.0
        %756 = vmatpush2.msra.mxu0 0.0
        %757 = vmatprep.mubr.f32.mxu0 0.0
        %758 = vmatmul.mubr.f32.gmra.mxu0 %v691
        %v759 = vpop.f32.mrf.mxu0
        %v760 = vadd.f32 0.0, %v759
        %v761 = vpop.f32.mrf.mxu0
        %762 = vdwg.mxu0
        %763 = vst.msk [vmem:[#allocation2] sm:$0xff] %vm598, %v760
        %764 = vrot.lane.b32.xlu0 %v503, 120
        %v765 = vpop.permute.xlu0 %764
        %766 = vrot.lane.b32.xlu0 %v578, 120
        %v767 = vpop.permute.xlu0 %766
        %v768 = vsel %vm598, %v765, 0
        %v770 = vsel %vm598, %v767, 0
        %772 = vmatprep.subr.mxu0 0.0
        %773 = vmatpush1.xpose.msra.mxu0 0.0
        %774 = vmatprep.subr.mxu0 0.0
        %775 = vmatpush1.xpose.msra.mxu0 0.0
        %776 = vmatprep.subr.mxu0 0.0
        %777 = vmatpush1.xpose.msra.mxu0 0.0
        %778 = vmatprep.subr.mxu0 0.0
        %779 = vmatpush1.xpose.msra.mxu0 0.0
        %780 = vmatprep.subr.mxu0 0.0
        %781 = vmatpush1.xpose.msra.mxu0 0.0
        %782 = vmatprep.subr.mxu0 0.0
        %783 = vmatpush1.xpose.msra.mxu0 0.0
        %784 = vmatprep.subr.mxu0 0.0
        %785 = vmatpush1.xpose.msra.mxu0 0.0
        %786 = vmatprep.subr.mxu0 0.0
        %787 = vmatpush1.xpose.msra.mxu0 0.0
        %788 = vmatprep.subr.mxu0 0.0
        %789 = vmatpush1.xpose.msra.mxu0 0.0
        %790 = vmatprep.subr.mxu0 0.0
        %791 = vmatpush1.xpose.msra.mxu0 0.0
        %792 = vmatprep.subr.mxu0 0.0
        %793 = vmatpush1.xpose.msra.mxu0 0.0
        %794 = vmatprep.subr.mxu0 0.0
        %795 = vmatpush1.xpose.msra.mxu0 0.0
        %796 = vmatprep.subr.mxu0 0.0
        %797 = vmatpush1.xpose.msra.mxu0 0.0
        %798 = vmatprep.subr.mxu0 0.0
        %799 = vmatpush1.xpose.msra.mxu0 0.0
        %800 = vmatprep.subr.mxu0 0.0
        %801 = vmatpush1.xpose.msra.mxu0 0.0
        %802 = vmatprep.subr.mxu0 0.0
        %803 = vmatpush1.xpose.msra.mxu0 %v770
        %804 = vmatprep.subr.mxu0 0.0
        %805 = vmatpush2.xpose.msra.mxu0 0.0
        %806 = vmatprep.subr.mxu0 0.0
        %807 = vmatpush2.xpose.msra.mxu0 0.0
        %808 = vmatprep.subr.mxu0 0.0
        %809 = vmatpush2.xpose.msra.mxu0 0.0
        %810 = vmatprep.subr.mxu0 0.0
        %811 = vmatpush2.xpose.msra.mxu0 0.0
        %812 = vmatprep.subr.mxu0 0.0
        %813 = vmatpush2.xpose.msra.mxu0 0.0
        %814 = vmatprep.subr.mxu0 0.0
        %815 = vmatpush2.xpose.msra.mxu0 0.0
        %816 = vmatprep.subr.mxu0 0.0
        %817 = vmatpush2.xpose.msra.mxu0 0.0
        %818 = vmatprep.subr.mxu0 0.0
        %819 = vmatpush2.xpose.msra.mxu0 0.0
        %820 = vmatprep.subr.mxu0 0.0
        %821 = vmatpush2.xpose.msra.mxu0 0.0
        %822 = vmatprep.subr.mxu0 0.0
        %823 = vmatpush2.xpose.msra.mxu0 0.0
        %824 = vmatprep.subr.mxu0 0.0
        %825 = vmatpush2.xpose.msra.mxu0 0.0
        %826 = vmatprep.subr.mxu0 0.0
        %827 = vmatpush2.xpose.msra.mxu0 0.0
        %828 = vmatprep.subr.mxu0 0.0
        %829 = vmatpush2.xpose.msra.mxu0 0.0
        %830 = vmatprep.subr.mxu0 0.0
        %831 = vmatpush2.xpose.msra.mxu0 0.0
        %832 = vmatprep.subr.mxu0 0.0
        %833 = vmatpush2.xpose.msra.mxu0 0.0
        %834 = vmatprep.subr.mxu0 0.0
        %835 = vmatpush2.xpose.msra.mxu0 0.0
        %836 = vmatprep.mubr.f32.mxu0 0.0
        %837 = vmatmul.mubr.f32.gmra.mxu0 %v768
        %v838 = vpop.f32.mrf.mxu0
        %v839 = vadd.f32 0.0, %v838
        %v840 = vpop.f32.mrf.mxu0
        %841 = vdwg.mxu0
        %v842 = vsel %vm597, %v839, -1e+30
        %v843 = vsel %vm598, %v842, -inf
        %844 = vmax.xlane.f32.xlu0 %v843
        %v845 = vpop.xlane.xlu0 %844
        %v846 = vsub.f32 %v842, %v845
        %v847 = vmul.f32 %v846, 1.442695
        %v848 = vpow.pop %v847
        %v849 = vsel %vm598, %v848, 0.0
        %850 = vadd.xlane.f32.xlu0 %v849
        %v851 = vpop.xlane.xlu0 %850
        %v852 = vrcp.pop %v851
        %v853 = vmul.f32 %v848, %v852
        %854 = vrot.lane.b32.xlu0 %v578, 88
        %v855 = vpop.permute.xlu0 %854
        %v858 = vsel %vm598, %v853, 0
        %860 = vmatprep.subr.mxu0 0.0
        %861 = vmatpush1.msra.mxu0 0.0
        %862 = vmatprep.subr.mxu0 0.0
        %863 = vmatpush1.msra.mxu0 0.0
        %864 = vmatprep.subr.mxu0 0.0
        %865 = vmatpush1.msra.mxu0 0.0
        %866 = vmatprep.subr.mxu0 0.0
        %867 = vmatpush1.msra.mxu0 0.0
        %868 = vmatprep.subr.mxu0 0.0
        %869 = vmatpush1.msra.mxu0 0.0
        %870 = vmatprep.subr.mxu0 0.0
        %871 = vmatpush1.msra.mxu0 0.0
        %872 = vmatprep.subr.mxu0 0.0
        %873 = vmatpush1.msra.mxu0 0.0
        %874 = vmatprep.subr.mxu0 0.0
        %875 = vmatpush1.msra.mxu0 0.0
        %876 = vmatprep.subr.mxu0 0.0
        %877 = vmatpush1.msra.mxu0 0.0
        %878 = vmatprep.subr.mxu0 0.0
        %879 = vmatpush1.msra.mxu0 0.0
        %880 = vmatprep.subr.mxu0 0.0
        %881 = vmatpush1.msra.mxu0 0.0
        %882 = vmatprep.subr.mxu0 0.0
        %883 = vmatpush1.msra.mxu0 0.0
        %884 = vmatprep.subr.mxu0 0.0
        %885 = vmatpush1.msra.mxu0 0.0
        %886 = vmatprep.subr.mxu0 0.0
        %887 = vmatpush1.msra.mxu0 0.0
        %888 = vmatprep.subr.mxu0 0.0
        %889 = vmatpush1.msra.mxu0 0.0
        %890 = vmatprep.subr.mxu0 0.0
        %891 = vmatpush1.msra.mxu0 %v855
        %892 = vmatprep.subr.mxu0 0.0
        %893 = vmatpush2.msra.mxu0 0.0
        %894 = vmatprep.subr.mxu0 0.0
        %895 = vmatpush2.msra.mxu0 0.0
        %896 = vmatprep.subr.mxu0 0.0
        %897 = vmatpush2.msra.mxu0 0.0
        %898 = vmatprep.subr.mxu0 0.0
        %899 = vmatpush2.msra.mxu0 0.0
        %900 = vmatprep.subr.mxu0 0.0
        %901 = vmatpush2.msra.mxu0 0.0
        %902 = vmatprep.subr.mxu0 0.0
        %903 = vmatpush2.msra.mxu0 0.0
        %904 = vmatprep.subr.mxu0 0.0
        %905 = vmatpush2.msra.mxu0 0.0
        %906 = vmatprep.subr.mxu0 0.0
        %907 = vmatpush2.msra.mxu0 0.0
        %908 = vmatprep.subr.mxu0 0.0
        %909 = vmatpush2.msra.mxu0 0.0
        %910 = vmatprep.subr.mxu0 0.0
        %911 = vmatpush2.msra.mxu0 0.0
        %912 = vmatprep.subr.mxu0 0.0
        %913 = vmatpush2.msra.mxu0 0.0
        %914 = vmatprep.subr.mxu0 0.0
        %915 = vmatpush2.msra.mxu0 0.0
        %916 = vmatprep.subr.mxu0 0.0
        %917 = vmatpush2.msra.mxu0 0.0
        %918 = vmatprep.subr.mxu0 0.0
        %919 = vmatpush2.msra.mxu0 0.0
        %920 = vmatprep.subr.mxu0 0.0
        %921 = vmatpush2.msra.mxu0 0.0
        %922 = vmatprep.subr.mxu0 0.0
        %923 = vmatpush2.msra.mxu0 0.0
        %924 = vmatprep.mubr.f32.mxu0 0.0
        %925 = vmatmul.mubr.f32.gmra.mxu0 %v858
        %v926 = vpop.f32.mrf.mxu0
        %v927 = vadd.f32 0.0, %v926
        %v928 = vpop.f32.mrf.mxu0
        %929 = vdwg.mxu0
        %931 = vrot.lane.b32.xlu0 %v927, 8
        %v932 = vpop.permute.xlu0 %931
        %vm934 = vcmask 130112
        %935 = vst.msk [vmem:[#allocation2] sm:$0xff] %vm934, %v932
        %936 = vrot.lane.b32.xlu0 %v503, 112
        %v937 = vpop.permute.xlu0 %936
        %938 = vrot.lane.b32.xlu0 %v578, 112
        %v939 = vpop.permute.xlu0 %938
        %v940 = vsel %vm598, %v937, 0
        %v942 = vsel %vm598, %v939, 0
        %944 = vmatprep.subr.mxu0 0.0
        %945 = vmatpush1.xpose.msra.mxu0 0.0
        %946 = vmatprep.subr.mxu0 0.0
        %947 = vmatpush1.xpose.msra.mxu0 0.0
        %948 = vmatprep.subr.mxu0 0.0
        %949 = vmatpush1.xpose.msra.mxu0 0.0
        %950 = vmatprep.subr.mxu0 0.0
        %951 = vmatpush1.xpose.msra.mxu0 0.0
        %952 = vmatprep.subr.mxu0 0.0
        %953 = vmatpush1.xpose.msra.mxu0 0.0
        %954 = vmatprep.subr.mxu0 0.0
        %955 = vmatpush1.xpose.msra.mxu0 0.0
        %956 = vmatprep.subr.mxu0 0.0
        %957 = vmatpush1.xpose.msra.mxu0 0.0
        %958 = vmatprep.subr.mxu0 0.0
        %959 = vmatpush1.xpose.msra.mxu0 0.0
        %960 = vmatprep.subr.mxu0 0.0
        %961 = vmatpush1.xpose.msra.mxu0 0.0
        %962 = vmatprep.subr.mxu0 0.0
        %963 = vmatpush1.xpose.msra.mxu0 0.0
        %964 = vmatprep.subr.mxu0 0.0
        %965 = vmatpush1.xpose.msra.mxu0 0.0
        %966 = vmatprep.subr.mxu0 0.0
        %967 = vmatpush1.xpose.msra.mxu0 0.0
        %968 = vmatprep.subr.mxu0 0.0
        %969 = vmatpush1.xpose.msra.mxu0 0.0
        %970 = vmatprep.subr.mxu0 0.0
        %971 = vmatpush1.xpose.msra.mxu0 0.0
        %972 = vmatprep.subr.mxu0 0.0
        %973 = vmatpush1.xpose.msra.mxu0 0.0
        %974 = vmatprep.subr.mxu0 0.0
        %975 = vmatpush1.xpose.msra.mxu0 %v942
        %976 = vmatprep.subr.mxu0 0.0
        %977 = vmatpush2.xpose.msra.mxu0 0.0
        %978 = vmatprep.subr.mxu0 0.0
        %979 = vmatpush2.xpose.msra.mxu0 0.0
        %980 = vmatprep.subr.mxu0 0.0
        %981 = vmatpush2.xpose.msra.mxu0 0.0
        %982 = vmatprep.subr.mxu0 0.0
        %983 = vmatpush2.xpose.msra.mxu0 0.0
        %984 = vmatprep.subr.mxu0 0.0
        %985 = vmatpush2.xpose.msra.mxu0 0.0
        %986 = vmatprep.subr.mxu0 0.0
        %987 = vmatpush2.xpose.msra.mxu0 0.0
        %988 = vmatprep.subr.mxu0 0.0
        %989 = vmatpush2.xpose.msra.mxu0 0.0
        %990 = vmatprep.subr.mxu0 0.0
        %991 = vmatpush2.xpose.msra.mxu0 0.0
        %992 = vmatprep.subr.mxu0 0.0
        %993 = vmatpush2.xpose.msra.mxu0 0.0
        %994 = vmatprep.subr.mxu0 0.0
        %995 = vmatpush2.xpose.msra.mxu0 0.0
        %996 = vmatprep.subr.mxu0 0.0
        %997 = vmatpush2.xpose.msra.mxu0 0.0
        %998 = vmatprep.subr.mxu0 0.0
        %999 = vmatpush2.xpose.msra.mxu0 0.0
        %1000 = vmatprep.subr.mxu0 0.0
        %1001 = vmatpush2.xpose.msra.mxu0 0.0
        %1002 = vmatprep.subr.mxu0 0.0
        %1003 = vmatpush2.xpose.msra.mxu0 0.0
        %1004 = vmatprep.subr.mxu0 0.0
        %1005 = vmatpush2.xpose.msra.mxu0 0.0
        %1006 = vmatprep.subr.mxu0 0.0
        %1007 = vmatpush2.xpose.msra.mxu0 0.0
        %1008 = vmatprep.mubr.f32.mxu0 0.0
        %1009 = vmatmul.mubr.f32.gmra.mxu0 %v940
        %v1010 = vpop.f32.mrf.mxu0
        %v1011 = vadd.f32 0.0, %v1010
        %v1012 = vpop.f32.mrf.mxu0
        %1013 = vdwg.mxu0
        %v1014 = vsel %vm597, %v1011, -1e+30
        %v1015 = vsel %vm598, %v1014, -inf
        %1016 = vmax.xlane.f32.xlu0 %v1015
        %v1017 = vpop.xlane.xlu0 %1016
        %v1018 = vsub.f32 %v1014, %v1017
        %v1019 = vmul.f32 %v1018, 1.442695
        %v1020 = vpow.pop %v1019
        %v1021 = vsel %vm598, %v1020, 0.0
        %1022 = vadd.xlane.f32.xlu0 %v1021
        %v1023 = vpop.xlane.xlu0 %1022
        %v1024 = vrcp.pop %v1023
        %v1025 = vmul.f32 %v1020, %v1024
        %1026 = vrot.lane.b32.xlu0 %v578, 80
        %v1027 = vpop.permute.xlu0 %1026
        %v1030 = vsel %vm598, %v1025, 0
        %1032 = vmatprep.subr.mxu0 0.0
        %1033 = vmatpush1.msra.mxu0 0.0
        %1034 = vmatprep.subr.mxu0 0.0
        %1035 = vmatpush1.msra.mxu0 0.0
        %1036 = vmatprep.subr.mxu0 0.0
        %1037 = vmatpush1.msra.mxu0 0.0
        %1038 = vmatprep.subr.mxu0 0.0
        %1039 = vmatpush1.msra.mxu0 0.0
        %1040 = vmatprep.subr.mxu0 0.0
        %1041 = vmatpush1.msra.mxu0 0.0
        %1042 = vmatprep.subr.mxu0 0.0
        %1043 = vmatpush1.msra.mxu0 0.0
        %1044 = vmatprep.subr.mxu0 0.0
        %1045 = vmatpush1.msra.mxu0 0.0
        %1046 = vmatprep.subr.mxu0 0.0
        %1047 = vmatpush1.msra.mxu0 0.0
        %1048 = vmatprep.subr.mxu0 0.0
        %1049 = vmatpush1.msra.mxu0 0.0
        %1050 = vmatprep.subr.mxu0 0.0
        %1051 = vmatpush1.msra.mxu0 0.0
        %1052 = vmatprep.subr.mxu0 0.0
        %1053 = vmatpush1.msra.mxu0 0.0
        %1054 = vmatprep.subr.mxu0 0.0
        %1055 = vmatpush1.msra.mxu0 0.0
        %1056 = vmatprep.subr.mxu0 0.0
        %1057 = vmatpush1.msra.mxu0 0.0
        %1058 = vmatprep.subr.mxu0 0.0
        %1059 = vmatpush1.msra.mxu0 0.0
        %1060 = vmatprep.subr.mxu0 0.0
        %1061 = vmatpush1.msra.mxu0 0.0
        %1062 = vmatprep.subr.mxu0 0.0
        %1063 = vmatpush1.msra.mxu0 %v1027
        %1064 = vmatprep.subr.mxu0 0.0
        %1065 = vmatpush2.msra.mxu0 0.0
        %1066 = vmatprep.subr.mxu0 0.0
        %1067 = vmatpush2.msra.mxu0 0.0
        %1068 = vmatprep.subr.mxu0 0.0
        %1069 = vmatpush2.msra.mxu0 0.0
        %1070 = vmatprep.subr.mxu0 0.0
        %1071 = vmatpush2.msra.mxu0 0.0
        %1072 = vmatprep.subr.mxu0 0.0
        %1073 = vmatpush2.msra.mxu0 0.0
        %1074 = vmatprep.subr.mxu0 0.0
        %1075 = vmatpush2.msra.mxu0 0.0
        %1076 = vmatprep.subr.mxu0 0.0
        %1077 = vmatpush2.msra.mxu0 0.0
        %1078 = vmatprep.subr.mxu0 0.0
        %1079 = vmatpush2.msra.mxu0 0.0
        %1080 = vmatprep.subr.mxu0 0.0
        %1081 = vmatpush2.msra.mxu0 0.0
        %1082 = vmatprep.subr.mxu0 0.0
        %1083 = vmatpush2.msra.mxu0 0.0
        %1084 = vmatprep.subr.mxu0 0.0
        %1085 = vmatpush2.msra.mxu0 0.0
        %1086 = vmatprep.subr.mxu0 0.0
        %1087 = vmatpush2.msra.mxu0 0.0
        %1088 = vmatprep.subr.mxu0 0.0
        %1089 = vmatpush2.msra.mxu0 0.0
        %1090 = vmatprep.subr.mxu0 0.0
        %1091 = vmatpush2.msra.mxu0 0.0
        %1092 = vmatprep.subr.mxu0 0.0
        %1093 = vmatpush2.msra.mxu0 0.0
        %1094 = vmatprep.subr.mxu0 0.0
        %1095 = vmatpush2.msra.mxu0 0.0
        %1096 = vmatprep.mubr.f32.mxu0 0.0
        %1097 = vmatmul.mubr.f32.gmra.mxu0 %v1030
        %v1098 = vpop.f32.mrf.mxu0
        %v1099 = vadd.f32 0.0, %v1098
        %v1100 = vpop.f32.mrf.mxu0
        %1101 = vdwg.mxu0
        %1103 = vrot.lane.b32.xlu0 %v1099, 16
        %v1104 = vpop.permute.xlu0 %1103
        %vm1106 = vcmask 195712
        %1107 = vst.msk [vmem:[#allocation2] sm:$0xff] %vm1106, %v1104
        %1108 = vrot.lane.b32.xlu0 %v503, 104
        %v1109 = vpop.permute.xlu0 %1108
        %1110 = vrot.lane.b32.xlu0 %v578, 104
        %v1111 = vpop.permute.xlu0 %1110
        %v1112 = vsel %vm598, %v1109, 0
        %v1114 = vsel %vm598, %v1111, 0
        %1116 = vmatprep.subr.mxu0 0.0
        %1117 = vmatpush1.xpose.msra.mxu0 0.0
        %1118 = vmatprep.subr.mxu0 0.0
        %1119 = vmatpush1.xpose.msra.mxu0 0.0
        %1120 = vmatprep.subr.mxu0 0.0
        %1121 = vmatpush1.xpose.msra.mxu0 0.0
        %1122 = vmatprep.subr.mxu0 0.0
        %1123 = vmatpush1.xpose.msra.mxu0 0.0
        %1124 = vmatprep.subr.mxu0 0.0
        %1125 = vmatpush1.xpose.msra.mxu0 0.0
        %1126 = vmatprep.subr.mxu0 0.0
        %1127 = vmatpush1.xpose.msra.mxu0 0.0
        %1128 = vmatprep.subr.mxu0 0.0
        %1129 = vmatpush1.xpose.msra.mxu0 0.0
        %1130 = vmatprep.subr.mxu0 0.0
        %1131 = vmatpush1.xpose.msra.mxu0 0.0
        %1132 = vmatprep.subr.mxu0 0.0
        %1133 = vmatpush1.xpose.msra.mxu0 0.0
        %1134 = vmatprep.subr.mxu0 0.0
        %1135 = vmatpush1.xpose.msra.mxu0 0.0
        %1136 = vmatprep.subr.mxu0 0.0
        %1137 = vmatpush1.xpose.msra.mxu0 0.0
        %1138 = vmatprep.subr.mxu0 0.0
        %1139 = vmatpush1.xpose.msra.mxu0 0.0
        %1140 = vmatprep.subr.mxu0 0.0
        %1141 = vmatpush1.xpose.msra.mxu0 0.0
        %1142 = vmatprep.subr.mxu0 0.0
        %1143 = vmatpush1.xpose.msra.mxu0 0.0
        %1144 = vmatprep.subr.mxu0 0.0
        %1145 = vmatpush1.xpose.msra.mxu0 0.0
        %1146 = vmatprep.subr.mxu0 0.0
        %1147 = vmatpush1.xpose.msra.mxu0 %v1114
        %1148 = vmatprep.subr.mxu0 0.0
        %1149 = vmatpush2.xpose.msra.mxu0 0.0
        %1150 = vmatprep.subr.mxu0 0.0
        %1151 = vmatpush2.xpose.msra.mxu0 0.0
        %1152 = vmatprep.subr.mxu0 0.0
        %1153 = vmatpush2.xpose.msra.mxu0 0.0
        %1154 = vmatprep.subr.mxu0 0.0
        %1155 = vmatpush2.xpose.msra.mxu0 0.0
        %1156 = vmatprep.subr.mxu0 0.0
        %1157 = vmatpush2.xpose.msra.mxu0 0.0
        %1158 = vmatprep.subr.mxu0 0.0
        %1159 = vmatpush2.xpose.msra.mxu0 0.0
        %1160 = vmatprep.subr.mxu0 0.0
        %1161 = vmatpush2.xpose.msra.mxu0 0.0
        %1162 = vmatprep.subr.mxu0 0.0
        %1163 = vmatpush2.xpose.msra.mxu0 0.0
        %1164 = vmatprep.subr.mxu0 0.0
        %1165 = vmatpush2.xpose.msra.mxu0 0.0
        %1166 = vmatprep.subr.mxu0 0.0
        %1167 = vmatpush2.xpose.msra.mxu0 0.0
        %1168 = vmatprep.subr.mxu0 0.0
        %1169 = vmatpush2.xpose.msra.mxu0 0.0
        %1170 = vmatprep.subr.mxu0 0.0
        %1171 = vmatpush2.xpose.msra.mxu0 0.0
        %1172 = vmatprep.subr.mxu0 0.0
        %1173 = vmatpush2.xpose.msra.mxu0 0.0
        %1174 = vmatprep.subr.mxu0 0.0
        %1175 = vmatpush2.xpose.msra.mxu0 0.0
        %1176 = vmatprep.subr.mxu0 0.0
        %1177 = vmatpush2.xpose.msra.mxu0 0.0
        %1178 = vmatprep.subr.mxu0 0.0
        %1179 = vmatpush2.xpose.msra.mxu0 0.0
        %1180 = vmatprep.mubr.f32.mxu0 0.0
        %1181 = vmatmul.mubr.f32.gmra.mxu0 %v1112
        %v1182 = vpop.f32.mrf.mxu0
        %v1183 = vadd.f32 0.0, %v1182
        %v1184 = vpop.f32.mrf.mxu0
        %1185 = vdwg.mxu0
        %v1186 = vsel %vm597, %v1183, -1e+30
        %v1187 = vsel %vm598, %v1186, -inf
        %1188 = vmax.xlane.f32.xlu0 %v1187
        %v1189 = vpop.xlane.xlu0 %1188
        %v1190 = vsub.f32 %v1186, %v1189
        %v1191 = vmul.f32 %v1190, 1.442695
        %v1192 = vpow.pop %v1191
        %v1193 = vsel %vm598, %v1192, 0.0
        %1194 = vadd.xlane.f32.xlu0 %v1193
        %v1195 = vpop.xlane.xlu0 %1194
        %v1196 = vrcp.pop %v1195
        %v1197 = vmul.f32 %v1192, %v1196
        %1198 = vrot.lane.b32.xlu0 %v578, 72
        %v1199 = vpop.permute.xlu0 %1198
        %v1202 = vsel %vm598, %v1197, 0
        %1204 = vmatprep.subr.mxu0 0.0
        %1205 = vmatpush1.msra.mxu0 0.0
        %1206 = vmatprep.subr.mxu0 0.0
        %1207 = vmatpush1.msra.mxu0 0.0
        %1208 = vmatprep.subr.mxu0 0.0
        %1209 = vmatpush1.msra.mxu0 0.0
        %1210 = vmatprep.subr.mxu0 0.0
        %1211 = vmatpush1.msra.mxu0 0.0
        %1212 = vmatprep.subr.mxu0 0.0
        %1213 = vmatpush1.msra.mxu0 0.0
        %1214 = vmatprep.subr.mxu0 0.0
        %1215 = vmatpush1.msra.mxu0 0.0
        %1216 = vmatprep.subr.mxu0 0.0
        %1217 = vmatpush1.msra.mxu0 0.0
        %1218 = vmatprep.subr.mxu0 0.0
        %1219 = vmatpush1.msra.mxu0 0.0
        %1220 = vmatprep.subr.mxu0 0.0
        %1221 = vmatpush1.msra.mxu0 0.0
        %1222 = vmatprep.subr.mxu0 0.0
        %1223 = vmatpush1.msra.mxu0 0.0
        %1224 = vmatprep.subr.mxu0 0.0
        %1225 = vmatpush1.msra.mxu0 0.0
        %1226 = vmatprep.subr.mxu0 0.0
        %1227 = vmatpush1.msra.mxu0 0.0
        %1228 = vmatprep.subr.mxu0 0.0
        %1229 = vmatpush1.msra.mxu0 0.0
        %1230 = vmatprep.subr.mxu0 0.0
        %1231 = vmatpush1.msra.mxu0 0.0
        %1232 = vmatprep.subr.mxu0 0.0
        %1233 = vmatpush1.msra.mxu0 0.0
        %1234 = vmatprep.subr.mxu0 0.0
        %1235 = vmatpush1.msra.mxu0 %v1199
        %1236 = vmatprep.subr.mxu0 0.0
        %1237 = vmatpush2.msra.mxu0 0.0
        %1238 = vmatprep.subr.mxu0 0.0
        %1239 = vmatpush2.msra.mxu0 0.0
        %1240 = vmatprep.subr.mxu0 0.0
        %1241 = vmatpush2.msra.mxu0 0.0
        %1242 = vmatprep.subr.mxu0 0.0
        %1243 = vmatpush2.msra.mxu0 0.0
        %1244 = vmatprep.subr.mxu0 0.0
        %1245 = vmatpush2.msra.mxu0 0.0
        %1246 = vmatprep.subr.mxu0 0.0
        %1247 = vmatpush2.msra.mxu0 0.0
        %1248 = vmatprep.subr.mxu0 0.0
        %1249 = vmatpush2.msra.mxu0 0.0
        %1250 = vmatprep.subr.mxu0 0.0
        %1251 = vmatpush2.msra.mxu0 0.0
        %1252 = vmatprep.subr.mxu0 0.0
        %1253 = vmatpush2.msra.mxu0 0.0
        %1254 = vmatprep.subr.mxu0 0.0
        %1255 = vmatpush2.msra.mxu0 0.0
        %1256 = vmatprep.subr.mxu0 0.0
        %1257 = vmatpush2.msra.mxu0 0.0
        %1258 = vmatprep.subr.mxu0 0.0
        %1259 = vmatpush2.msra.mxu0 0.0
        %1260 = vmatprep.subr.mxu0 0.0
        %1261 = vmatpush2.msra.mxu0 0.0
        %1262 = vmatprep.subr.mxu0 0.0
        %1263 = vmatpush2.msra.mxu0 0.0
        %1264 = vmatprep.subr.mxu0 0.0
        %1265 = vmatpush2.msra.mxu0 0.0
        %1266 = vmatprep.subr.mxu0 0.0
        %1267 = vmatpush2.msra.mxu0 0.0
        %1268 = vmatprep.mubr.f32.mxu0 0.0
        %1269 = vmatmul.mubr.f32.gmra.mxu0 %v1202
        %v1270 = vpop.f32.mrf.mxu0
        %v1271 = vadd.f32 0.0, %v1270
        %v1272 = vpop.f32.mrf.mxu0
        %1273 = vdwg.mxu0
        %1275 = vrot.lane.b32.xlu0 %v1271, 24
        %v1276 = vpop.permute.xlu0 %1275
        %vm1278 = vcmask 261312
        %1279 = vst.msk [vmem:[#allocation2] sm:$0xff] %vm1278, %v1276
        %v1280 = vld [vmem:[#allocation2] sm:$0xff]
        %v1281 = vld [vmem:[#allocation12] sm:$0xff]
        %v1282 = vld [vmem:[#allocation12 + $0x8] sm:$0xff]
        %v1283 = vld [vmem:[#allocation12 + $0x10] sm:$0xff]
        %v1284 = vld [vmem:[#allocation12 + $0x18] sm:$0xff]
        %v1285 = vld [vmem:[%s6] sm:$0x1]
        %v1287 = vlaneseq
        %v1288 = vshrl.u32 %v1287, 7
        %v1289 = vsub.s32 0, %v1288
        %v1290 = vrot.slane %v1285, %v1289
        %v1293 = vsel %vm429, %v1280, 0
        %1295 = vmatprep.subr.mxu0 0.0
        %1296 = vmatpush1.msra.mxu0 0.0
        %1297 = vmatprep.subr.mxu0 0.0
        %1298 = vmatpush1.msra.mxu0 0.0
        %1299 = vmatprep.subr.mxu0 0.0
        %1300 = vmatpush1.msra.mxu0 0.0
        %1301 = vmatprep.subr.mxu0 0.0
        %1302 = vmatpush1.msra.mxu0 0.0
        %1303 = vmatprep.subr.mxu0 0.0
        %1304 = vmatpush1.msra.mxu0 0.0
        %1305 = vmatprep.subr.mxu0 0.0
        %1306 = vmatpush1.msra.mxu0 0.0
        %1307 = vmatprep.subr.mxu0 0.0
        %1308 = vmatpush1.msra.mxu0 0.0
        %1309 = vmatprep.subr.mxu0 0.0
        %1310 = vmatpush1.msra.mxu0 0.0
        %1311 = vmatprep.subr.mxu0 0.0
        %1312 = vmatpush1.msra.mxu0 0.0
        %1313 = vmatprep.subr.mxu0 0.0
        %1314 = vmatpush1.msra.mxu0 0.0
        %1315 = vmatprep.subr.mxu0 0.0
        %1316 = vmatpush1.msra.mxu0 0.0
        %1317 = vmatprep.subr.mxu0 0.0
        %1318 = vmatpush1.msra.mxu0 0.0
        %1319 = vmatprep.subr.mxu0 0.0
        %1320 = vmatpush1.msra.mxu0 %v1284
        %1321 = vmatprep.subr.mxu0 0.0
        %1322 = vmatpush1.msra.mxu0 %v1283
        %1323 = vmatprep.subr.mxu0 0.0
        %1324 = vmatpush1.msra.mxu0 %v1282
        %1325 = vmatprep.subr.mxu0 0.0
        %1326 = vmatpush1.msra.mxu0 %v1281
        %1327 = vmatprep.subr.mxu0 0.0
        %1328 = vmatpush2.msra.mxu0 0.0
        %1329 = vmatprep.subr.mxu0 0.0
        %1330 = vmatpush2.msra.mxu0 0.0
        %1331 = vmatprep.subr.mxu0 0.0
        %1332 = vmatpush2.msra.mxu0 0.0
        %1333 = vmatprep.subr.mxu0 0.0
        %1334 = vmatpush2.msra.mxu0 0.0
        %1335 = vmatprep.subr.mxu0 0.0
        %1336 = vmatpush2.msra.mxu0 0.0
        %1337 = vmatprep.subr.mxu0 0.0
        %1338 = vmatpush2.msra.mxu0 0.0
        %1339 = vmatprep.subr.mxu0 0.0
        %1340 = vmatpush2.msra.mxu0 0.0
        %1341 = vmatprep.subr.mxu0 0.0
        %1342 = vmatpush2.msra.mxu0 0.0
        %1343 = vmatprep.subr.mxu0 0.0
        %1344 = vmatpush2.msra.mxu0 0.0
        %1345 = vmatprep.subr.mxu0 0.0
        %1346 = vmatpush2.msra.mxu0 0.0
        %1347 = vmatprep.subr.mxu0 0.0
        %1348 = vmatpush2.msra.mxu0 0.0
        %1349 = vmatprep.subr.mxu0 0.0
        %1350 = vmatpush2.msra.mxu0 0.0
        %1351 = vmatprep.subr.mxu0 0.0
        %1352 = vmatpush2.msra.mxu0 0.0
        %1353 = vmatprep.subr.mxu0 0.0
        %1354 = vmatpush2.msra.mxu0 0.0
        %1355 = vmatprep.subr.mxu0 0.0
        %1356 = vmatpush2.msra.mxu0 0.0
        %1357 = vmatprep.subr.mxu0 0.0
        %1358 = vmatpush2.msra.mxu0 0.0
        %1359 = vmatprep.mubr.f32.mxu0 0.0
        %1360 = vmatmul.mubr.f32.gmra.mxu0 %v1293
        %v1361 = vpop.f32.mrf.mxu0
        %v1362 = vadd.f32 %v1290, %v1361
        %v1363 = vpop.f32.mrf.mxu0
        %1364 = vdwg.mxu0
        %1365 = vst.msk [vmem:[%s422] sm:$0xff] %vm429, %v1362
        %s1366 = sand.u32 %s215, 1
        %s1367 = scalar_lea.sflag [#allocation5], %s1366
        %s1368 = sand.u32 %s215, 1
        %s1369 = smul.addr %s1368, 8
        %s1370 = scalar_lea.vmem [#allocation14], %s1369
        // Predicated region
        $region73: #{tpu_custom_call.1} parent=47 // pred_check
          %p1371 = pneg %p225
        $region74: #{tpu_custom_call.1} parent=47 // pred_check_branch
          %1373 = sbr.rel (%p1371) target = $region76
        $region75: #{tpu_custom_call.1} parent=47 // pred_region
          %s1375 = ssub.s32 128, 128
          %1376 = vsyncadd %s1367, %s1375
          %s1377 = sadd.s32 %s34, %s33
          %s1378 = smul.addr %s1377, 128
          %s1379 = scalar_lea.hbm %s7, %s1378
          %s1381 = sshll.u32 %s1370, 4
          %s1382 = int_to_ptr.vmem [resolvable:$true] %s1381
          %1384 = dma.vmem_to_hbm [thread:$0]  %s1382, 128, %s1379, %s1367
        $region76: #{tpu_custom_call.1} parent=47 // pred_fallthru
          _
      $region48: #{tpu_custom_call.1} parent=5 // pred_fallthru
        _
      %p1385 = scmp.le.s32.totalorder 2, %s24
      // Predicated region
      $region77: #{tpu_custom_call.1} parent=5 // pred_check
        %p1386 = pneg %p1385
      $region78: #{tpu_custom_call.1} parent=5 // pred_check_branch
        %1388 = sbr.rel (%p1386) target = $region80
      $region79: #{tpu_custom_call.1} parent=5 // pred_region
        %s1389 = ssub.s32 %s24, 2
        // Predicated region
        $region81: #{tpu_custom_call.1} parent=79 // pred_check
          %p1390 = pneg %p231
        $region82: #{tpu_custom_call.1} parent=79 // pred_check_branch
          %1392 = sbr.rel (%p1390) target = $region84
        $region83: #{tpu_custom_call.1} parent=79 // pred_region
          %s1393 = sand.u32 %s216, 1
          %s1394 = scalar_lea.sflag [#allocation5], %s1393
          %s1395 = sand.u32 %s216, 1
          %s1396 = smul.addr %s1395, 8
          %s1397 = scalar_lea.vmem [#allocation14], %s1396
          %1398 = dma.done %s1394, 128
        $region84: #{tpu_custom_call.1} parent=79 // pred_fallthru
          _
      $region80: #{tpu_custom_call.1} parent=5 // pred_fallthru
        _
    $region6: #{tpu_custom_call.1} parent=1 // loop_footer
      %s28 = sadd.s32 1, %s24
    $region7: #{tpu_custom_call.1} parent=1 // loop_footer_branch
      %23 = sbr.rel target = $region3
    $region8: #{tpu_custom_call.1} parent=1 // loop_exit
      _
    %1399 = vsyncpa [#allocation4], 1
    %s1400 = scalar_lea.sflag [#allocation4], 1
    %1401 = vsyncpa %s1400, 1
    %1402 = vsyncpa [#allocation7], 1
    %s1403 = scalar_lea.sflag [#allocation7], 1
    %1404 = vsyncpa %s1403, 1
    %1405 = vsyncpa [#allocation10], 1
    %1406 = vsyncpa [#allocation13], 1
    %1407 = vsyncpa [#allocation5], 1
    %s1408 = scalar_lea.sflag [#allocation5], 1
    %1409 = vsyncpa %s1408, 1

</llo_original>
